<compile_context>
chip_gen: v7x
topology: tpu7x:2x2x1
jax: 0.10.0
libtpu: 0.0.40
codegen_flags: <defaults>
</compile_context>

<pallas_src>
import functools
import math

import numpy as np
import jax
import jax.numpy as jnp
from jax.experimental import pallas as pl
from jax.experimental.pallas import tpu as pltpu

WIN = 11
NSIG = 0.1


def _gauss_1d(win=WIN, nsig=NSIG):
    """Same construction as GaussianKernel.gkern1D (norm.cdf via erf), float64."""
    x = np.linspace(-nsig, nsig, win + 1)
    cdf = np.array([0.5 * (1.0 + math.erf(v / math.sqrt(2.0))) for v in x], np.float64)
    k = np.diff(cdf)
    return k / k.sum()


@functools.lru_cache(maxsize=None)
def _roll_is_jnp_convention():
    """True iff pltpu.roll(x, a, axis)[..., l] == x[..., (l - a) % n] (jnp.roll)."""
    def probe(x_ref, o_ref):
        o_ref[...] = pltpu.roll(x_ref[...], 1, axis=1)

    try:
        x = jax.lax.broadcasted_iota(jnp.float32, (8, 128), 1)
        y = np.asarray(pl.pallas_call(
            probe, out_shape=jax.ShapeDtypeStruct((8, 128), jnp.float32))(x))
        if y[0, 0] == 127.0:
            return True
        if y[0, 0] == 1.0:
            return False
    except Exception:
        pass
    return True  # documented / tested behavior matches jnp.roll


def _gauss3d_kernel(v_ref, planes_ref, o_ref, *, taps, pad, center_w,
                    sched_y, sched_z):
    """One grid step: g whole (X, Y*Z)-laid-out volumes, all three 1-D blurs in f32."""
    win = len(taps)
    half = win // 2
    g, X, Lp = v_ref.shape

    for i in range(g):                              # small static unroll (g <= 8)
        t = v_ref[i]                                # (X, Lp) float32

        # ---- X pass: exact f32 shift-and-add along the (sublane) X axis, zero pad.
        zrow = jnp.zeros((pad, Lp), jnp.float32)
        tp = jnp.concatenate([zrow, t, zrow], axis=0)          # (X + 2*pad, Lp)
        acc = taps[0] * tp[pad - half:pad - half + X, :]
        for j in range(1, win):
            off = pad - half + j
            acc = acc + taps[j] * tp[off:off + X, :]
        t = acc

        # ---- Y / Z passes: 11-tap lane-roll stencils with precomputed masked weights.
        def lane_pass(src, sched):
            out = center_w * src
            for amt, row in sched:
                w_row = planes_ref[row:row + 1, :]             # (1, Lp) weight*mask
                out = out + w_row * pltpu.roll(src, amt, axis=1)
            return out

        t = lane_pass(t, sched_y)                   # blur along Y (lane stride Z)
        t = lane_pass(t, sched_z)                   # blur along Z (lane stride 1)

        o_ref[i] = t


def gaussian_blur3d(x, win=WIN, nsig=NSIG, block_bytes=1 << 20):
    """Pallas equivalent of GaussianKernel.forward.  x: [N, C, X, Y, Z] float32."""
    N, C, X, Y, Z = x.shape
    if C != 1:
        raise ValueError("conv3d weight is (1, 1, win, win, win): C must be 1")
    k = _gauss_1d(win, nsig)
    half = win // 2
    NC, YZ = N * C, Y * Z
    Lp = ((YZ + 127) // 128) * 128                  # lane-dense (unmasked vst) slab

    v = x.astype(jnp.float32).reshape(NC, X, YZ)    # free (contiguous) reshape
    if Lp != YZ:
        v = jnp.pad(v, ((0, 0), (0, 0), (0, Lp - YZ)))

    # Volumes per grid step: largest divisor of NC that fits the per-buffer budget,
    # keeps the in-kernel unroll small, and leaves >= 2 grid steps when possible.
    vol_bytes = X * Lp * 4
    divs = [d for d in range(1, NC + 1)
            if NC % d == 0 and d * vol_bytes <= block_bytes and d <= 8] or [1]
    multi = [d for d in divs if NC // d >= 2]
    g = max(multi) if multi else max(divs)

    jnp_roll = _roll_is_jnp_convention()

    # Host-precomputed masked-weight rows (weight * zero-padding edge mask) and the
    # matching lane-roll amounts for the Y and Z passes.
    lane = np.arange(Lp)
    rows, sched_y, sched_z = [], [], []

    def build(coord, dim, step, sched):
        for s in range(1, half + 1):
            if s >= dim:
                break
            d = s * step
            amt_plus = (Lp - d) if jnp_roll else d          # fetches lane l + d
            amt_minus = d if jnp_roll else (Lp - d)         # fetches lane l - d
            w_plus = np.where(coord < dim - s, k[half + s], 0.0)
            w_minus = np.where(coord >= s, k[half - s], 0.0)
            sched.append((int(amt_plus), len(rows))); rows.append(w_plus)
            sched.append((int(amt_minus), len(rows))); rows.append(w_minus)

    build(lane // Z, Y, Z, sched_y)                 # Y pass: lane stride Z
    build(lane % Z, Z, 1, sched_z)                  # Z pass: lane stride 1
    if not rows:
        rows.append(np.zeros(Lp))
    planes = jnp.asarray(np.stack(rows).astype(np.float32))    # (n_rows, Lp)
    n_rows = planes.shape[0]

    kern = functools.partial(
        _gauss3d_kernel,
        taps=tuple(float(t) for t in k),
        pad=max(8, -(-half // 8) * 8),
        center_w=float(k[half]),
        sched_y=tuple(sched_y),
        sched_z=tuple(sched_z),
    )

    flops = 3 * 2 * win * NC * X * Lp
    bytes_accessed = (2 * NC * X * Lp + n_rows * Lp) * 4

    out = pl.pallas_call(
        kern,
        out_shape=jax.ShapeDtypeStruct((NC, X, Lp), jnp.float32),
        grid_spec=pltpu.PrefetchScalarGridSpec(
            num_scalar_prefetch=0,
            grid=(NC // g,),
            in_specs=[
                pl.BlockSpec((g, X, Lp), lambda i: (i, 0, 0)),
                pl.BlockSpec((n_rows, Lp), lambda i: (0, 0)),
            ],
            out_specs=pl.BlockSpec((g, X, Lp), lambda i: (i, 0, 0)),
        ),
        compiler_params=pltpu.CompilerParams(
            dimension_semantics=("parallel",)),
        cost_estimate=pl.CostEstimate(flops=int(flops), transcendentals=0,
                                      bytes_accessed=int(bytes_accessed)),
    )(v, planes)

    if Lp != YZ:
        out = out[:, :, :YZ]
    return out.reshape(N, C, X, Y, Z)


def _reference(x, win=WIN, nsig=NSIG):
    """NumPy float64 replica of F.conv3d(x, gx*gy*gz, padding=win//2)."""
    k = _gauss_1d(win, nsig)
    half = win // 2
    out = np.asarray(x, np.float64)
    for axis in (2, 3, 4):
        moved = np.moveaxis(out, axis, -1)
        n = moved.shape[-1]
        zeros = np.zeros(moved.shape[:-1] + (half,))
        padded = np.concatenate([zeros, moved, zeros], axis=-1)
        acc = np.zeros_like(moved)
        for u in range(win):
            acc = acc + k[u] * padded[..., u:u + n]
        out = np.moveaxis(acc, -1, axis)
    return out.astype(np.float32)


if __name__ == "__main__":
    key = jax.random.PRNGKey(0)
    # conv3d weight is (1, 1, 11, 11, 11) -> single input channel.
    x = jax.random.normal(key, (2, 1, 16, 16, 16), dtype=jnp.float32)

    out = jax.block_until_ready(gaussian_blur3d(x))

    ref = _reference(np.asarray(x))
    np.testing.assert_allclose(np.asarray(out), ref, rtol=1e-4, atol=1e-4)
    print("KERNEL_OK")
</pallas_src>

<mosaic_0001>
module attributes {stable_mosaic.version = 11 : i64} {
  func.func @probe(%arg0: memref<8x128xf32, #tpu.memory_space<vmem>>, %arg1: memref<8x128xf32, #tpu.memory_space<vmem>>) attributes {dimension_semantics = [], scalar_prefetch = 0 : i64, scratch_operands = 0 : i64, tpu.core_type = #tpu.core_type<tc>} {
    %c0 = arith.constant 0 : index
    %c0_0 = arith.constant 0 : index
    %0 = vector.load %arg0[%c0, %c0_0] : memref<8x128xf32, #tpu.memory_space<vmem>>, vector<8x128xf32>
    %c1_i32 = arith.constant 1 : i32
    %1 = tpu.dynamic_rotate %0 by %c1_i32 dim 1 : vector<8x128xf32>, i32 -> vector<8x128xf32>
    %c0_1 = arith.constant 0 : index
    %c0_2 = arith.constant 0 : index
    %2 = vector.load %arg1[%c0_1, %c0_2] : memref<8x128xf32, #tpu.memory_space<vmem>>, vector<8x128xf32>
    tpu.vector_store %arg1[%c0_1, %c0_2], %1 {strides = array<i32>} : memref<8x128xf32, #tpu.memory_space<vmem>>, vector<8x128xf32>,
    return
  }
}

module attributes {stable_mosaic.version = 11 : i64} {
  func.func @_gauss3d_kernel(%arg0: i32, %arg1: memref<1x16x256xf32, #tpu.memory_space<vmem>>, %arg2: memref<20x256xf32, #tpu.memory_space<vmem>>, %arg3: memref<1x16x256xf32, #tpu.memory_space<vmem>>) attributes {dimension_semantics = [#tpu.dimension_semantics<parallel>], iteration_bounds = array<i64: 2>, scalar_prefetch = 0 : i64, scratch_operands = 0 : i64, tpu.core_type = #tpu.core_type<tc>, window_params = [{transform_indices = @transform_0, window_bounds = array<i64: 1, 16, 256>}, {pipeline_mode = #tpu.pipeline_mode<synchronous>, transform_indices = @transform_1, window_bounds = array<i64: 20, 256>}, {transform_indices = @transform_2, window_bounds = array<i64: 1, 16, 256>}]} {
    %c0 = arith.constant 0 : index
    %c0_0 = arith.constant 0 : index
    %c0_1 = arith.constant 0 : index
    %0 = vector.load %arg1[%c0, %c0_0, %c0_1] : memref<1x16x256xf32, #tpu.memory_space<vmem>>, vector<1x16x256xf32>
    %1 = vector.shape_cast %0 : vector<1x16x256xf32> to vector<16x256xf32>
    %cst = arith.constant 0.000000e+00 : f32
    %2 = vector.broadcast %cst : f32 to vector<8x256xf32>
    %3 = tpu.concatenate %2, %1, %2 in 0 : vector<8x256xf32>, vector<16x256xf32>, vector<8x256xf32> -> vector<32x256xf32>
    %4 = vector.extract_strided_slice %3 {offsets = [3, 0], sizes = [16, 256], strides = [1, 1]} : vector<32x256xf32> to vector<16x256xf32>
    %cst_2 = arith.constant 0.0906838849 : f32
    %5 = vector.broadcast %cst_2 : f32 to vector<16x256xf32>
    %6 = arith.mulf %5, %4 : vector<16x256xf32>
    %7 = vector.extract_strided_slice %3 {offsets = [4, 0], sizes = [16, 256], strides = [1, 1]} : vector<32x256xf32> to vector<16x256xf32>
    %cst_3 = arith.constant 0.0908188819 : f32
    %8 = vector.broadcast %cst_3 : f32 to vector<16x256xf32>
    %9 = arith.mulf %8, %7 : vector<16x256xf32>
    %10 = arith.addf %6, %9 : vector<16x256xf32>
    %11 = vector.extract_strided_slice %3 {offsets = [5, 0], sizes = [16, 256], strides = [1, 1]} : vector<32x256xf32> to vector<16x256xf32>
    %cst_4 = arith.constant 0.0909240245 : f32
    %12 = vector.broadcast %cst_4 : f32 to vector<16x256xf32>
    %13 = arith.mulf %12, %11 : vector<16x256xf32>
    %14 = arith.addf %10, %13 : vector<16x256xf32>
    %15 = vector.extract_strided_slice %3 {offsets = [6, 0], sizes = [16, 256], strides = [1, 1]} : vector<32x256xf32> to vector<16x256xf32>
    %cst_5 = arith.constant 0.0909991934 : f32
    %16 = vector.broadcast %cst_5 : f32 to vector<16x256xf32>
    %17 = arith.mulf %16, %15 : vector<16x256xf32>
    %18 = arith.addf %14, %17 : vector<16x256xf32>
    %19 = vector.extract_strided_slice %3 {offsets = [7, 0], sizes = [16, 256], strides = [1, 1]} : vector<32x256xf32> to vector<16x256xf32>
    %cst_6 = arith.constant 0.0910443291 : f32
    %20 = vector.broadcast %cst_6 : f32 to vector<16x256xf32>
    %21 = arith.mulf %20, %19 : vector<16x256xf32>
    %22 = arith.addf %18, %21 : vector<16x256xf32>
    %23 = vector.extract_strided_slice %3 {offsets = [8, 0], sizes = [16, 256], strides = [1, 1]} : vector<32x256xf32> to vector<16x256xf32>
    %cst_7 = arith.constant 0.0910593792 : f32
    %24 = vector.broadcast %cst_7 : f32 to vector<16x256xf32>
    %25 = arith.mulf %24, %23 : vector<16x256xf32>
    %26 = arith.addf %22, %25 : vector<16x256xf32>
    %27 = vector.extract_strided_slice %3 {offsets = [9, 0], sizes = [16, 256], strides = [1, 1]} : vector<32x256xf32> to vector<16x256xf32>
    %cst_8 = arith.constant 0.0910443291 : f32
    %28 = vector.broadcast %cst_8 : f32 to vector<16x256xf32>
    %29 = arith.mulf %28, %27 : vector<16x256xf32>
    %30 = arith.addf %26, %29 : vector<16x256xf32>
    %31 = vector.extract_strided_slice %3 {offsets = [10, 0], sizes = [16, 256], strides = [1, 1]} : vector<32x256xf32> to vector<16x256xf32>
    %cst_9 = arith.constant 0.0909991934 : f32
    %32 = vector.broadcast %cst_9 : f32 to vector<16x256xf32>
    %33 = arith.mulf %32, %31 : vector<16x256xf32>
    %34 = arith.addf %30, %33 : vector<16x256xf32>
    %35 = vector.extract_strided_slice %3 {offsets = [11, 0], sizes = [16, 256], strides = [1, 1]} : vector<32x256xf32> to vector<16x256xf32>
    %cst_10 = arith.constant 0.0909240245 : f32
    %36 = vector.broadcast %cst_10 : f32 to vector<16x256xf32>
    %37 = arith.mulf %36, %35 : vector<16x256xf32>
    %38 = arith.addf %34, %37 : vector<16x256xf32>
    %39 = vector.extract_strided_slice %3 {offsets = [12, 0], sizes = [16, 256], strides = [1, 1]} : vector<32x256xf32> to vector<16x256xf32>
    %cst_11 = arith.constant 0.0908188819 : f32
    %40 = vector.broadcast %cst_11 : f32 to vector<16x256xf32>
    %41 = arith.mulf %40, %39 : vector<16x256xf32>
    %42 = arith.addf %38, %41 : vector<16x256xf32>
    %43 = vector.extract_strided_slice %3 {offsets = [13, 0], sizes = [16, 256], strides = [1, 1]} : vector<32x256xf32> to vector<16x256xf32>
    %cst_12 = arith.constant 0.0906838849 : f32
    %44 = vector.broadcast %cst_12 : f32 to vector<16x256xf32>
    %45 = arith.mulf %44, %43 : vector<16x256xf32>
    %46 = arith.addf %42, %45 : vector<16x256xf32>
    %cst_13 = arith.constant 0.0910593792 : f32
    %47 = vector.broadcast %cst_13 : f32 to vector<16x256xf32>
    %48 = arith.mulf %47, %46 : vector<16x256xf32>
    %c0_14 = arith.constant 0 : index
    %c0_15 = arith.constant 0 : index
    %49 = vector.load %arg2[%c0_14, %c0_15] : memref<20x256xf32, #tpu.memory_space<vmem>>, vector<1x256xf32>
    %c240_i32 = arith.constant 240 : i32
    %50 = tpu.dynamic_rotate %46 by %c240_i32 dim 1 : vector<16x256xf32>, i32 -> vector<16x256xf32>
    %51 = vector.broadcast %49 : vector<1x256xf32> to vector<16x256xf32>
    %52 = arith.mulf %51, %50 : vector<16x256xf32>
    %53 = arith.addf %48, %52 : vector<16x256xf32>
    %c1 = arith.constant 1 : index
    %c0_16 = arith.constant 0 : index
    %54 = vector.load %arg2[%c1, %c0_16] : memref<20x256xf32, #tpu.memory_space<vmem>>, vector<1x256xf32>
    %c16_i32 = arith.constant 16 : i32
    %55 = tpu.dynamic_rotate %46 by %c16_i32 dim 1 : vector<16x256xf32>, i32 -> vector<16x256xf32>
    %56 = vector.broadcast %54 : vector<1x256xf32> to vector<16x256xf32>
    %57 = arith.mulf %56, %55 : vector<16x256xf32>
    %58 = arith.addf %53, %57 : vector<16x256xf32>
    %c2 = arith.constant 2 : index
    %c0_17 = arith.constant 0 : index
    %59 = vector.load %arg2[%c2, %c0_17] : memref<20x256xf32, #tpu.memory_space<vmem>>, vector<1x256xf32>
    %c224_i32 = arith.constant 224 : i32
    %60 = tpu.dynamic_rotate %46 by %c224_i32 dim 1 : vector<16x256xf32>, i32 -> vector<16x256xf32>
    %61 = vector.broadcast %59 : vector<1x256xf32> to vector<16x256xf32>
    %62 = arith.mulf %61, %60 : vector<16x256xf32>
    %63 = arith.addf %58, %62 : vector<16x256xf32>
    %c3 = arith.constant 3 : index
    %c0_18 = arith.constant 0 : index
    %64 = vector.load %arg2[%c3, %c0_18] : memref<20x256xf32, #tpu.memory_space<vmem>>, vector<1x256xf32>
    %c32_i32 = arith.constant 32 : i32
    %65 = tpu.dynamic_rotate %46 by %c32_i32 dim 1 : vector<16x256xf32>, i32 -> vector<16x256xf32>
    %66 = vector.broadcast %64 : vector<1x256xf32> to vector<16x256xf32>
    %67 = arith.mulf %66, %65 : vector<16x256xf32>
    %68 = arith.addf %63, %67 : vector<16x256xf32>
    %c4 = arith.constant 4 : index
    %c0_19 = arith.constant 0 : index
    %69 = vector.load %arg2[%c4, %c0_19] : memref<20x256xf32, #tpu.memory_space<vmem>>, vector<1x256xf32>
    %c208_i32 = arith.constant 208 : i32
    %70 = tpu.dynamic_rotate %46 by %c208_i32 dim 1 : vector<16x256xf32>, i32 -> vector<16x256xf32>
    %71 = vector.broadcast %69 : vector<1x256xf32> to vector<16x256xf32>
    %72 = arith.mulf %71, %70 : vector<16x256xf32>
    %73 = arith.addf %68, %72 : vector<16x256xf32>
    %c5 = arith.constant 5 : index
    %c0_20 = arith.constant 0 : index
    %74 = vector.load %arg2[%c5, %c0_20] : memref<20x256xf32, #tpu.memory_space<vmem>>, vector<1x256xf32>
    %c48_i32 = arith.constant 48 : i32
    %75 = tpu.dynamic_rotate %46 by %c48_i32 dim 1 : vector<16x256xf32>, i32 -> vector<16x256xf32>
    %76 = vector.broadcast %74 : vector<1x256xf32> to vector<16x256xf32>
    %77 = arith.mulf %76, %75 : vector<16x256xf32>
    %78 = arith.addf %73, %77 : vector<16x256xf32>
    %c6 = arith.constant 6 : index
    %c0_21 = arith.constant 0 : index
    %79 = vector.load %arg2[%c6, %c0_21] : memref<20x256xf32, #tpu.memory_space<vmem>>, vector<1x256xf32>
    %c192_i32 = arith.constant 192 : i32
    %80 = tpu.dynamic_rotate %46 by %c192_i32 dim 1 : vector<16x256xf32>, i32 -> vector<16x256xf32>
    %81 = vector.broadcast %79 : vector<1x256xf32> to vector<16x256xf32>
    %82 = arith.mulf %81, %80 : vector<16x256xf32>
    %83 = arith.addf %78, %82 : vector<16x256xf32>
    %c7 = arith.constant 7 : index
    %c0_22 = arith.constant 0 : index
    %84 = vector.load %arg2[%c7, %c0_22] : memref<20x256xf32, #tpu.memory_space<vmem>>, vector<1x256xf32>
    %c64_i32 = arith.constant 64 : i32
    %85 = tpu.dynamic_rotate %46 by %c64_i32 dim 1 : vector<16x256xf32>, i32 -> vector<16x256xf32>
    %86 = vector.broadcast %84 : vector<1x256xf32> to vector<16x256xf32>
    %87 = arith.mulf %86, %85 : vector<16x256xf32>
    %88 = arith.addf %83, %87 : vector<16x256xf32>
    %c8 = arith.constant 8 : index
    %c0_23 = arith.constant 0 : index
    %89 = vector.load %arg2[%c8, %c0_23] : memref<20x256xf32, #tpu.memory_space<vmem>>, vector<1x256xf32>
    %c176_i32 = arith.constant 176 : i32
    %90 = tpu.dynamic_rotate %46 by %c176_i32 dim 1 : vector<16x256xf32>, i32 -> vector<16x256xf32>
    %91 = vector.broadcast %89 : vector<1x256xf32> to vector<16x256xf32>
    %92 = arith.mulf %91, %90 : vector<16x256xf32>
    %93 = arith.addf %88, %92 : vector<16x256xf32>
    %c9 = arith.constant 9 : index
    %c0_24 = arith.constant 0 : index
    %94 = vector.load %arg2[%c9, %c0_24] : memref<20x256xf32, #tpu.memory_space<vmem>>, vector<1x256xf32>
    %c80_i32 = arith.constant 80 : i32
    %95 = tpu.dynamic_rotate %46 by %c80_i32 dim 1 : vector<16x256xf32>, i32 -> vector<16x256xf32>
    %96 = vector.broadcast %94 : vector<1x256xf32> to vector<16x256xf32>
    %97 = arith.mulf %96, %95 : vector<16x256xf32>
    %98 = arith.addf %93, %97 : vector<16x256xf32>
    %cst_25 = arith.constant 0.0910593792 : f32
    %99 = vector.broadcast %cst_25 : f32 to vector<16x256xf32>
    %100 = arith.mulf %99, %98 : vector<16x256xf32>
    %c10 = arith.constant 10 : index
    %c0_26 = arith.constant 0 : index
    %101 = vector.load %arg2[%c10, %c0_26] : memref<20x256xf32, #tpu.memory_space<vmem>>, vector<1x256xf32>
    %c255_i32 = arith.constant 255 : i32
    %102 = tpu.dynamic_rotate %98 by %c255_i32 dim 1 : vector<16x256xf32>, i32 -> vector<16x256xf32>
    %103 = vector.broadcast %101 : vector<1x256xf32> to vector<16x256xf32>
    %104 = arith.mulf %103, %102 : vector<16x256xf32>
    %105 = arith.addf %100, %104 : vector<16x256xf32>
    %c11 = arith.constant 11 : index
    %c0_27 = arith.constant 0 : index
    %106 = vector.load %arg2[%c11, %c0_27] : memref<20x256xf32, #tpu.memory_space<vmem>>, vector<1x256xf32>
    %c1_i32 = arith.constant 1 : i32
    %107 = tpu.dynamic_rotate %98 by %c1_i32 dim 1 : vector<16x256xf32>, i32 -> vector<16x256xf32>
    %108 = vector.broadcast %106 : vector<1x256xf32> to vector<16x256xf32>
    %109 = arith.mulf %108, %107 : vector<16x256xf32>
    %110 = arith.addf %105, %109 : vector<16x256xf32>
    %c12 = arith.constant 12 : index
    %c0_28 = arith.constant 0 : index
    %111 = vector.load %arg2[%c12, %c0_28] : memref<20x256xf32, #tpu.memory_space<vmem>>, vector<1x256xf32>
    %c254_i32 = arith.constant 254 : i32
    %112 = tpu.dynamic_rotate %98 by %c254_i32 dim 1 : vector<16x256xf32>, i32 -> vector<16x256xf32>
    %113 = vector.broadcast %111 : vector<1x256xf32> to vector<16x256xf32>
    %114 = arith.mulf %113, %112 : vector<16x256xf32>
    %115 = arith.addf %110, %114 : vector<16x256xf32>
    %c13 = arith.constant 13 : index
    %c0_29 = arith.constant 0 : index
    %116 = vector.load %arg2[%c13, %c0_29] : memref<20x256xf32, #tpu.memory_space<vmem>>, vector<1x256xf32>
    %c2_i32 = arith.constant 2 : i32
    %117 = tpu.dynamic_rotate %98 by %c2_i32 dim 1 : vector<16x256xf32>, i32 -> vector<16x256xf32>
    %118 = vector.broadcast %116 : vector<1x256xf32> to vector<16x256xf32>
    %119 = arith.mulf %118, %117 : vector<16x256xf32>
    %120 = arith.addf %115, %119 : vector<16x256xf32>
    %c14 = arith.constant 14 : index
    %c0_30 = arith.constant 0 : index
    %121 = vector.load %arg2[%c14, %c0_30] : memref<20x256xf32, #tpu.memory_space<vmem>>, vector<1x256xf32>
    %c253_i32 = arith.constant 253 : i32
    %122 = tpu.dynamic_rotate %98 by %c253_i32 dim 1 : vector<16x256xf32>, i32 -> vector<16x256xf32>
    %123 = vector.broadcast %121 : vector<1x256xf32> to vector<16x256xf32>
    %124 = arith.mulf %123, %122 : vector<16x256xf32>
    %125 = arith.addf %120, %124 : vector<16x256xf32>
    %c15 = arith.constant 15 : index
    %c0_31 = arith.constant 0 : index
    %126 = vector.load %arg2[%c15, %c0_31] : memref<20x256xf32, #tpu.memory_space<vmem>>, vector<1x256xf32>
    %c3_i32 = arith.constant 3 : i32
    %127 = tpu.dynamic_rotate %98 by %c3_i32 dim 1 : vector<16x256xf32>, i32 -> vector<16x256xf32>
    %128 = vector.broadcast %126 : vector<1x256xf32> to vector<16x256xf32>
    %129 = arith.mulf %128, %127 : vector<16x256xf32>
    %130 = arith.addf %125, %129 : vector<16x256xf32>
    %c16 = arith.constant 16 : index
    %c0_32 = arith.constant 0 : index
    %131 = vector.load %arg2[%c16, %c0_32] : memref<20x256xf32, #tpu.memory_space<vmem>>, vector<1x256xf32>
    %c252_i32 = arith.constant 252 : i32
    %132 = tpu.dynamic_rotate %98 by %c252_i32 dim 1 : vector<16x256xf32>, i32 -> vector<16x256xf32>
    %133 = vector.broadcast %131 : vector<1x256xf32> to vector<16x256xf32>
    %134 = arith.mulf %133, %132 : vector<16x256xf32>
    %135 = arith.addf %130, %134 : vector<16x256xf32>
    %c17 = arith.constant 17 : index
    %c0_33 = arith.constant 0 : index
    %136 = vector.load %arg2[%c17, %c0_33] : memref<20x256xf32, #tpu.memory_space<vmem>>, vector<1x256xf32>
    %c4_i32 = arith.constant 4 : i32
    %137 = tpu.dynamic_rotate %98 by %c4_i32 dim 1 : vector<16x256xf32>, i32 -> vector<16x256xf32>
    %138 = vector.broadcast %136 : vector<1x256xf32> to vector<16x256xf32>
    %139 = arith.mulf %138, %137 : vector<16x256xf32>
    %140 = arith.addf %135, %139 : vector<16x256xf32>
    %c18 = arith.constant 18 : index
    %c0_34 = arith.constant 0 : index
    %141 = vector.load %arg2[%c18, %c0_34] : memref<20x256xf32, #tpu.memory_space<vmem>>, vector<1x256xf32>
    %c251_i32 = arith.constant 251 : i32
    %142 = tpu.dynamic_rotate %98 by %c251_i32 dim 1 : vector<16x256xf32>, i32 -> vector<16x256xf32>
    %143 = vector.broadcast %141 : vector<1x256xf32> to vector<16x256xf32>
    %144 = arith.mulf %143, %142 : vector<16x256xf32>
    %145 = arith.addf %140, %144 : vector<16x256xf32>
    %c19 = arith.constant 19 : index
    %c0_35 = arith.constant 0 : index
    %146 = vector.load %arg2[%c19, %c0_35] : memref<20x256xf32, #tpu.memory_space<vmem>>, vector<1x256xf32>
    %c5_i32 = arith.constant 5 : i32
    %147 = tpu.dynamic_rotate %98 by %c5_i32 dim 1 : vector<16x256xf32>, i32 -> vector<16x256xf32>
    %148 = vector.broadcast %146 : vector<1x256xf32> to vector<16x256xf32>
    %149 = arith.mulf %148, %147 : vector<16x256xf32>
    %150 = arith.addf %145, %149 : vector<16x256xf32>
    %c0_36 = arith.constant 0 : index
    %c0_37 = arith.constant 0 : index
    %c0_38 = arith.constant 0 : index
    %151 = vector.load %arg3[%c0_36, %c0_37, %c0_38] : memref<1x16x256xf32, #tpu.memory_space<vmem>>, vector<1x16x256xf32>
    %152 = vector.shape_cast %151 : vector<1x16x256xf32> to vector<16x256xf32>
    %153 = vector.shape_cast %150 : vector<16x256xf32> to vector<1x16x256xf32>
    tpu.vector_store %arg3[%c0_36, %c0_37, %c0_38], %153 {strides = array<i32>} : memref<1x16x256xf32, #tpu.memory_space<vmem>>, vector<1x16x256xf32>,
    return
  }
  func.func @transform_0(%arg0: i32) -> (i32, i32, i32) {
    %c0_i32 = arith.constant 0 : i32
    %c0_i32_0 = arith.constant 0 : i32
    %c0_i32_1 = arith.constant 0 : i32
    return %arg0, %c0_i32, %c0_i32_0 : i32, i32, i32
  }
  func.func @transform_1(%arg0: i32) -> (i32, i32) {
    %c0_i32 = arith.constant 0 : i32
    %c0_i32_0 = arith.constant 0 : i32
    %c0_i32_1 = arith.constant 0 : i32
    return %c0_i32, %c0_i32_0 : i32, i32
  }
  func.func @transform_2(%arg0: i32) -> (i32, i32, i32) {
    %c0_i32 = arith.constant 0 : i32
    %c0_i32_0 = arith.constant 0 : i32
    %c0_i32_1 = arith.constant 0 : i32
    return %arg0, %c0_i32, %c0_i32_0 : i32, i32, i32
  }
}

</mosaic_0001>

<llo_original>
// kernel: tpu_custom_call.1
$region0: #{tpu_custom_call.1}
  #allocation0 [shape = 'u32[]', space=smem, size = 0x4, offset = 0x4, fixed_abs, tag = 'smem constant byte address 0x4 - core index']
  #allocation1 [shape = 'u32[144,128]{1,0:T(1,128)}', space=vmem, size = 0x12000, scoped, tag = 'internal scratch']
  %s0 = inlined_call_operand.hbm [shape: f32[8,128], index: 0, kind: input, shape index: {}]
  %s1 = inlined_call_operand.hbm [shape: f32[8,128], index: 1, kind: output, shape index: {}]
  %s2 = sld [smem:[#allocation0]]
  $region18: #{tpu_custom_call.1} parent=0
    _
  %s4 = ssub.s32 1, %s2
  %s5 = scalar_select 0, %s4, %s2
  $region1: #{tpu_custom_call.1} parent=0
    #allocation2 [shape = 'u8[4096]{0}', space=vmem, size = 0x1000, scoped, tag = 'input window, operand 0, single buffered']
    #allocation3 [shape = 's32[1]{0}', space=sflag, size = 0x4, scoped, tag = 'scoped memory for tpu_custom_call.1']
    #allocation4 [shape = 's32[1]{0}', space=sflag, size = 0x4, scoped, tag = 'scoped memory for tpu_custom_call.1']
    #allocation5 [shape = 'u8[4096]{0}', space=vmem, size = 0x1000, scoped, tag = 'output window, operand 0, single buffered']
    %6 = vsyncpa [#allocation3], 0
    %7 = vsyncpa [#allocation4], 0
    // Predicated region
    $region2: #{tpu_custom_call.1} parent=1 // pred_check
      _
    $region3: #{tpu_custom_call.1} parent=1 // pred_check_branch
      %9 = sbr.rel (0) target = $region5
    $region4: #{tpu_custom_call.1} parent=1 // pred_region
      %s11 = ssub.s32 128, 128
      %12 = vsyncadd [#allocation3], %s11
      %s14 = sshll.u32 [#allocation2], 4
      %s15 = int_to_ptr.vmem [resolvable:$true] %s14
      %17 = dma.hbm_to_vmem [thread:$0]  %s0, 128, %s15, [#allocation3]
    $region5: #{tpu_custom_call.1} parent=1 // pred_fallthru
      _
    // Predicated region
    $region6: #{tpu_custom_call.1} parent=1 // pred_check
      _
    $region7: #{tpu_custom_call.1} parent=1 // pred_check_branch
      %19 = sbr.rel (0) target = $region9
    $region8: #{tpu_custom_call.1} parent=1 // pred_region
      %20 = dma.done [#allocation3], 128
    $region9: #{tpu_custom_call.1} parent=1 // pred_fallthru
      _
    %v21 = vld [vmem:[#allocation2] sm:$0xff]
    %22 = vrot.lane.b32.xlu0 %v21, 1
    %v23 = vpop.permute.xlu0 %22
    %24 = vst [vmem:[#allocation5] sm:$0xff] %v23
    // Predicated region
    $region10: #{tpu_custom_call.1} parent=1 // pred_check
      _
    $region11: #{tpu_custom_call.1} parent=1 // pred_check_branch
      %26 = sbr.rel (0) target = $region13
    $region12: #{tpu_custom_call.1} parent=1 // pred_region
      %s28 = ssub.s32 128, 128
      %29 = vsyncadd [#allocation4], %s28
      %s31 = sshll.u32 [#allocation5], 4
      %s32 = int_to_ptr.vmem [resolvable:$true] %s31
      %34 = dma.vmem_to_hbm [thread:$0]  %s32, 128, %s1, [#allocation4]
    $region13: #{tpu_custom_call.1} parent=1 // pred_fallthru
      _
    // Predicated region
    $region14: #{tpu_custom_call.1} parent=1 // pred_check
      _
    $region15: #{tpu_custom_call.1} parent=1 // pred_check_branch
      %36 = sbr.rel (0) target = $region17
    $region16: #{tpu_custom_call.1} parent=1 // pred_region
      %37 = dma.done [#allocation4], 128
    $region17: #{tpu_custom_call.1} parent=1 // pred_fallthru
      _
    %38 = vsyncpa [#allocation3], 1
    %39 = vsyncpa [#allocation4], 1

// kernel: tpu_custom_call.1
$region0: #{tpu_custom_call.1}
  #allocation0 [shape = 'u32[]', space=smem, size = 0x4, offset = 0x4, fixed_abs, tag = 'smem constant byte address 0x4 - core index']
  #allocation1 [shape = 'u32[144,128]{1,0:T(1,128)}', space=vmem, size = 0x12000, scoped, tag = 'internal scratch']
  %s0 = inlined_call_operand.hbm [shape: f32[2,16,256], index: 0, kind: input, shape index: {}]
  %s1 = inlined_call_operand.hbm [shape: f32[20,256], index: 1, kind: input, shape index: {}]
  %s2 = inlined_call_operand.hbm [shape: f32[2,16,256], index: 2, kind: output, shape index: {}]
  %s3 = sld [smem:[#allocation0]]
  $region49: #{tpu_custom_call.1} parent=0
    _
  %s5 = ssub.s32 1, %s3
  %s6 = scalar_select 0, %s5, %s3
  $region1: #{tpu_custom_call.1} parent=0
    #allocation2 [shape = 'u8[32768]{0}', space=vmem, size = 0x8000, scoped, tag = 'input window, operand 0']
    #allocation3 [shape = 's32[2]{0}', space=sflag, size = 0x8, scoped, tag = 'scoped memory for tpu_custom_call.1']
    #allocation4 [shape = 's32[2]{0}', space=sflag, size = 0x8, scoped, tag = 'scoped memory for tpu_custom_call.1']
    #allocation5 [shape = 'u8[24576]{0}', space=vmem, size = 0x6000, scoped, tag = 'input window, operand 1, single buffered']
    #allocation6 [shape = 's32[1]{0}', space=sflag, size = 0x4, scoped, tag = 'scoped memory for tpu_custom_call.1']
    #allocation7 [shape = 'u8[32768]{0}', space=vmem, size = 0x8000, scoped, tag = 'output window, operand 0']
    %7 = vsyncpa [#allocation3], 0
    %s8 = scalar_lea.sflag [#allocation3], 1
    %9 = vsyncpa %s8, 0
    %10 = vsyncpa [#allocation6], 0
    %11 = vsyncpa [#allocation4], 0
    %s12 = scalar_lea.sflag [#allocation4], 1
    %13 = vsyncpa %s12, 0
    loop: start=0, step=1, limit=4
    $region2: #{tpu_custom_call.1} parent=1 // loop_pre_header
      _
    $region3: #{tpu_custom_call.1} parent=1 // loop_header
      %s15 = sphi 0, %s19
      %p16 = scmp.ge.s32.totalorder %s15, 4
      %s25 = sphi 0, %s27
      %s28 = sphi 0, %s25
      %s29 = sphi 0, %s28
      %s45 = sphi 0, %s29
      %s49 = sphi 0, %s49
      %s51 = sphi 0, %s49
      %s52 = sphi 0, %s51
      %s66 = sphi 0, %s52
      %s72 = sphi 0, %s74
      %s75 = sphi 0, %s72
      %s76 = sphi 0, %s75
      %s92 = sphi 0, %s76
    $region4: #{tpu_custom_call.1} parent=1 // loop_header_branch
      %18 = sbr.rel (%p16) target = $region8
    $region5: #{tpu_custom_call.1} parent=1 // loop_body
      %s20 = ssub.s32 %s15, 1
      %s21 = ssub.s32 %s15, 2
      %s22 = sadd.s32 %s15, 1
      %s23 = ssub.s32 %s15, %s22
      %p24 = scmp.eq.s32.totalorder %s23, 0
      %s26 = sadd.s32 %s25, 1
      %s27 = scalar_select %p24, %s25, %s26
      %p30 = pneg %p24
      %p31 = scmp.eq.s32.totalorder %s15, 1
      %p32 = por %p30, %p31
      %p33 = scmp.ne.s32.totalorder %s25, %s28
      %p34 = scmp.eq.s32.totalorder %s15, 0
      %p35 = por %p33, %p34
      %p36 = scmp.ne.s32.totalorder %s25, %s28
      %p37 = scmp.eq.s32.totalorder %s20, 1
      %p38 = por %p36, %p37
      %p39 = scmp.ne.s32.totalorder %s28, %s29
      %p40 = scmp.eq.s32.totalorder %s20, 0
      %p41 = por %p39, %p40
      %p42 = scmp.ne.s32.totalorder %s28, %s29
      %p43 = scmp.eq.s32.totalorder %s21, 1
      %p44 = por %p42, %p43
      %p46 = scmp.ne.s32.totalorder %s29, %s45
      %p47 = scmp.eq.s32.totalorder %s21, 0
      %p48 = por %p46, %p47
      %s50 = sadd.s32 %s49, 1
      %p53 = scmp.eq.s32.totalorder %s15, 1
      %p54 = scmp.ne.s32.totalorder %s49, %s51
      %p55 = scmp.eq.s32.totalorder %s15, 0
      %p56 = por %p54, %p55
      %p57 = scmp.ne.s32.totalorder %s49, %s51
      %p58 = scmp.eq.s32.totalorder %s20, 1
      %p59 = por %p57, %p58
      %p60 = scmp.ne.s32.totalorder %s51, %s52
      %p61 = scmp.eq.s32.totalorder %s20, 0
      %p62 = por %p60, %p61
      %p63 = scmp.ne.s32.totalorder %s51, %s52
      %p64 = scmp.eq.s32.totalorder %s21, 1
      %p65 = por %p63, %p64
      %p67 = scmp.ne.s32.totalorder %s52, %s66
      %p68 = scmp.eq.s32.totalorder %s21, 0
      %p69 = por %p67, %p68
      %s70 = ssub.s32 %s15, %s22
      %p71 = scmp.eq.s32.totalorder %s70, 0
      %s73 = sadd.s32 %s72, 1
      %s74 = scalar_select %p71, %s72, %s73
      %p77 = pneg %p71
      %p78 = scmp.eq.s32.totalorder %s15, 1
      %p79 = por %p77, %p78
      %p80 = scmp.ne.s32.totalorder %s72, %s75
      %p81 = scmp.eq.s32.totalorder %s15, 0
      %p82 = por %p80, %p81
      %p83 = scmp.ne.s32.totalorder %s72, %s75
      %p84 = scmp.eq.s32.totalorder %s20, 1
      %p85 = por %p83, %p84
      %p86 = scmp.ne.s32.totalorder %s75, %s76
      %p87 = scmp.eq.s32.totalorder %s20, 0
      %p88 = por %p86, %p87
      %p89 = scmp.ne.s32.totalorder %s75, %s76
      %p90 = scmp.eq.s32.totalorder %s21, 1
      %p91 = por %p89, %p90
      %p93 = scmp.ne.s32.totalorder %s76, %s92
      %p94 = scmp.eq.s32.totalorder %s21, 0
      %p95 = por %p93, %p94
      %p96 = scmp.le.s32.totalorder 1, %s15
      %p97 = scmp.lt.s32.totalorder %s15, 3
      %p98 = pnand %p96, %p97
      %p99 = pneg %p98
      // Predicated region
      $region9: #{tpu_custom_call.1} parent=5 // pred_check
        _
      $region10: #{tpu_custom_call.1} parent=5 // pred_check_branch
        %101 = sbr.rel (%p98) target = $region12
      $region11: #{tpu_custom_call.1} parent=5 // pred_region
        %s102 = ssub.s32 %s15, 1
        // Predicated region
        $region13: #{tpu_custom_call.1} parent=11 // pred_check
          %p103 = pneg %p62
        $region14: #{tpu_custom_call.1} parent=11 // pred_check_branch
          %105 = sbr.rel (%p103) target = $region16
        $region15: #{tpu_custom_call.1} parent=11 // pred_region
          %s107 = ssub.s32 768, 768
          %108 = vsyncadd [#allocation6], %s107
          %s109 = sshll.u32 [#allocation5], 4
          %s110 = int_to_ptr.vmem [resolvable:$true] %s109
          %115 = dma.hbm_to_vmem [thread:$0]  %s1, 768, %s110, [#allocation6], 256, 256, 16
        $region16: #{tpu_custom_call.1} parent=11 // pred_fallthru
          _
      $region12: #{tpu_custom_call.1} parent=5 // pred_fallthru
        _
      %p116 = scmp.lt.s32.totalorder %s15, 2
      // Predicated region
      $region17: #{tpu_custom_call.1} parent=5 // pred_check
        %p117 = pneg %p116
      $region18: #{tpu_custom_call.1} parent=5 // pred_check_branch
        %119 = sbr.rel (%p117) target = $region20
      $region19: #{tpu_custom_call.1} parent=5 // pred_region
        // Predicated region
        $region21: #{tpu_custom_call.1} parent=19 // pred_check
          %p120 = pneg %p35
        $region22: #{tpu_custom_call.1} parent=19 // pred_check_branch
          %122 = sbr.rel (%p120) target = $region24
        $region23: #{tpu_custom_call.1} parent=19 // pred_region
          %s123 = sand.u32 %s25, 1
          %s124 = scalar_lea.sflag [#allocation3], %s123
          %s125 = sand.u32 %s25, 1
          %s126 = smul.addr %s125, 32
          %s127 = scalar_lea.vmem [#allocation2], %s126
          %s129 = ssub.s32 512, 512
          %130 = vsyncadd %s124, %s129
          %s131 = smul.addr %s15, 4
          %s132 = smul.addr %s131, 128
          %s133 = scalar_lea.hbm %s0, %s132
          %s134 = sshll.u32 %s127, 4
          %s135 = int_to_ptr.vmem [resolvable:$true] %s134
          %140 = dma.hbm_to_vmem [thread:$0]  %s133, 512, %s135, %s124, 256, 256, 16
        $region24: #{tpu_custom_call.1} parent=19 // pred_fallthru
          _
      $region20: #{tpu_custom_call.1} parent=5 // pred_fallthru
        _
      %p141 = scmp.le.s32.totalorder 1, %s15
      %p142 = scmp.lt.s32.totalorder %s15, 3
      %p143 = pnand %p141, %p142
      %p144 = pneg %p143
      // Predicated region
      $region25: #{tpu_custom_call.1} parent=5 // pred_check
        _
      $region26: #{tpu_custom_call.1} parent=5 // pred_check_branch
        %146 = sbr.rel (%p143) target = $region28
      $region27: #{tpu_custom_call.1} parent=5 // pred_region
        %s147 = ssub.s32 %s15, 1
        %s148 = sand.u32 %s28, 1
        %s149 = scalar_lea.sflag [#allocation3], %s148
        %s150 = sand.u32 %s28, 1
        %s151 = smul.addr %s150, 32
        %s152 = scalar_lea.vmem [#allocation2], %s151
        // Predicated region
        $region29: #{tpu_custom_call.1} parent=27 // pred_check
          %p153 = pneg %p41
        $region30: #{tpu_custom_call.1} parent=27 // pred_check_branch
          %155 = sbr.rel (%p153) target = $region32
        $region31: #{tpu_custom_call.1} parent=27 // pred_region
          %156 = dma.done %s149, 512
        $region32: #{tpu_custom_call.1} parent=27 // pred_fallthru
          _
        // Predicated region
        $region33: #{tpu_custom_call.1} parent=27 // pred_check
          %p157 = pneg %p62
        $region34: #{tpu_custom_call.1} parent=27 // pred_check_branch
          %159 = sbr.rel (%p157) target = $region36
        $region35: #{tpu_custom_call.1} parent=27 // pred_region
          %160 = dma.done [#allocation6], 768
        $region36: #{tpu_custom_call.1} parent=27 // pred_fallthru
          _
        %s161 = sand.u32 %s28, 1
        %s162 = scalar_lea.sflag [#allocation3], %s161
        %s163 = sand.u32 %s28, 1
        %s164 = smul.addr %s163, 32
        %s165 = scalar_lea.vmem [#allocation2], %s164
        %p166 = pneg %p41
        %p167 = pneg %p38
        %p168 = pneg %p62
        %p169 = pneg %p59
        %p170 = pneg %p88
        %p171 = pneg %p85
        %s172 = sand.u32 %s75, 1
        %s173 = scalar_lea.sflag [#allocation4], %s172
        %s174 = sand.u32 %s75, 1
        %s175 = smul.addr %s174, 32
        %s176 = scalar_lea.vmem [#allocation7], %s175
        %v177 = vld [vmem:[%s152] sm:$0xff]
        %v178 = vld [vmem:[%s152 + $0x8] sm:$0xff]
        %v179 = vld [vmem:[%s152 + $0x10] sm:$0xff]
        %v180 = vld [vmem:[%s152 + $0x18] sm:$0xff]
        %v181 = vmul.f32 %v177, 0.090683885
        %v182 = vmul.f32 %v178, 0.090683885
        %v183 = vmul.f32 %v179, 0.090683885
        %v184 = vmul.f32 %v180, 0.090683885
        %v185 = vmul.f32 %v177, 0.09081888
        %v186 = vmul.f32 %v178, 0.09081888
        %v187 = vmul.f32 %v179, 0.09081888
        %v188 = vmul.f32 %v180, 0.09081888
        %vm194 = vcmask 1046528
        %v195 = vrot.slane 0.0, 1
        %v196 = vrot.slane %v185, 1
        %v197 = vsel %vm194, %v195, %v196
        %v198 = vrot.slane %v186, 1
        %v199 = vsel %vm194, %v195, %v198
        %v200 = vrot.slane %v187, 1
        %v201 = vsel %vm194, %v196, %v200
        %v202 = vrot.slane %v188, 1
        %v203 = vsel %vm194, %v198, %v202
        %v210 = vadd.f32 %v197, 0.0
        %v211 = vadd.f32 %v199, 0.0
        %v212 = vadd.f32 %v181, %v201
        %v213 = vadd.f32 %v182, %v203
        %v214 = vadd.f32 %v183, %v200
        %v215 = vadd.f32 %v184, %v202
        %v216 = vmul.f32 %v177, 0.090924025
        %v217 = vmul.f32 %v178, 0.090924025
        %v218 = vmul.f32 %v179, 0.090924025
        %v219 = vmul.f32 %v180, 0.090924025
        %vm224 = vcmask 1045504
        %v225 = vrot.slane 0.0, 2
        %v226 = vrot.slane %v216, 2
        %v227 = vsel %vm224, %v225, %v226
        %v228 = vrot.slane %v217, 2
        %v229 = vsel %vm224, %v225, %v228
        %v230 = vrot.slane %v218, 2
        %v231 = vsel %vm224, %v226, %v230
        %v232 = vrot.slane %v219, 2
        %v233 = vsel %vm224, %v228, %v232
        %v240 = vadd.f32 %v210, %v227
        %v241 = vadd.f32 %v211, %v229
        %v242 = vadd.f32 %v212, %v231
        %v243 = vadd.f32 %v213, %v233
        %v244 = vadd.f32 %v214, %v230
        %v245 = vadd.f32 %v215, %v232
        %v246 = vmul.f32 %v177, 0.09099919
        %v247 = vmul.f32 %v178, 0.09099919
        %v248 = vmul.f32 %v179, 0.09099919
        %v249 = vmul.f32 %v180, 0.09099919
        %vm254 = vcmask 1044480
        %v255 = vrot.slane 0.0, 3
        %v256 = vrot.slane %v246, 3
        %v257 = vsel %vm254, %v255, %v256
        %v258 = vrot.slane %v247, 3
        %v259 = vsel %vm254, %v255, %v258
        %v260 = vrot.slane %v248, 3
        %v261 = vsel %vm254, %v256, %v260
        %v262 = vrot.slane %v249, 3
        %v263 = vsel %vm254, %v258, %v262
        %v270 = vadd.f32 %v240, %v257
        %v271 = vadd.f32 %v241, %v259
        %v272 = vadd.f32 %v242, %v261
        %v273 = vadd.f32 %v243, %v263
        %v274 = vadd.f32 %v244, %v260
        %v275 = vadd.f32 %v245, %v262
        %v276 = vmul.f32 %v177, 0.09104433
        %v277 = vmul.f32 %v178, 0.09104433
        %v278 = vmul.f32 %v179, 0.09104433
        %v279 = vmul.f32 %v180, 0.09104433
        %vm284 = vcmask 1043456
        %v285 = vrot.slane 0.0, 4
        %v286 = vrot.slane %v276, 4
        %v287 = vsel %vm284, %v285, %v286
        %v288 = vrot.slane %v277, 4
        %v289 = vsel %vm284, %v285, %v288
        %v290 = vrot.slane %v278, 4
        %v291 = vsel %vm284, %v286, %v290
        %v292 = vrot.slane %v279, 4
        %v293 = vsel %vm284, %v288, %v292
        %v300 = vadd.f32 %v270, %v287
        %v301 = vadd.f32 %v271, %v289
        %v302 = vadd.f32 %v272, %v291
        %v303 = vadd.f32 %v273, %v293
        %v304 = vadd.f32 %v274, %v290
        %v305 = vadd.f32 %v275, %v292
        %v306 = vmul.f32 %v177, 0.09105938
        %v307 = vmul.f32 %v178, 0.09105938
        %v308 = vmul.f32 %v179, 0.09105938
        %v309 = vmul.f32 %v180, 0.09105938
        %vm314 = vcmask 1042432
        %v315 = vrot.slane %v306, 5
        %v316 = vrot.slane %v307, 5
        %v317 = vrot.slane %v308, 5
        %v318 = vsel %vm314, %v315, %v317
        %v319 = vrot.slane %v309, 5
        %v320 = vsel %vm314, %v316, %v319
        %v327 = vadd.f32 %v300, %v315
        %v328 = vadd.f32 %v301, %v316
        %v329 = vadd.f32 %v302, %v318
        %v330 = vadd.f32 %v303, %v320
        %v331 = vadd.f32 %v304, %v317
        %v332 = vadd.f32 %v305, %v319
        %vm333 = vcmask 1041408
        %v334 = vrot.slane %v276, 6
        %v335 = vrot.slane %v277, 6
        %v336 = vrot.slane %v278, 6
        %v337 = vsel %vm333, %v334, %v336
        %v338 = vrot.slane %v279, 6
        %v339 = vsel %vm333, %v335, %v338
        %v340 = vrot.slane 0.0, 6
        %v341 = vsel %vm333, %v336, %v340
        %v342 = vsel %vm333, %v338, %v340
        %v349 = vadd.f32 %v327, %v334
        %v350 = vadd.f32 %v328, %v335
        %v351 = vadd.f32 %v329, %v337
        %v352 = vadd.f32 %v330, %v339
        %v353 = vadd.f32 %v331, %v341
        %v354 = vadd.f32 %v332, %v342
        %vm355 = vcmask 1040384
        %v356 = vrot.slane %v246, 7
        %v357 = vrot.slane %v247, 7
        %v358 = vrot.slane %v248, 7
        %v359 = vsel %vm355, %v356, %v358
        %v360 = vrot.slane %v249, 7
        %v361 = vsel %vm355, %v357, %v360
        %v362 = vrot.slane 0.0, 7
        %v363 = vsel %vm355, %v358, %v362
        %v364 = vsel %vm355, %v360, %v362
        %v371 = vadd.f32 %v349, %v356
        %v372 = vadd.f32 %v350, %v357
        %v373 = vadd.f32 %v351, %v359
        %v374 = vadd.f32 %v352, %v361
        %v375 = vadd.f32 %v353, %v363
        %v376 = vadd.f32 %v354, %v364
        %v377 = vadd.f32 %v371, %v216
        %v378 = vadd.f32 %v372, %v217
        %v379 = vadd.f32 %v373, %v218
        %v380 = vadd.f32 %v374, %v219
        %v381 = vadd.f32 %v375, 0.0
        %v382 = vadd.f32 %v376, 0.0
        %v383 = vsel %vm194, %v200, %v195
        %v384 = vsel %vm194, %v202, %v195
        %v388 = vadd.f32 %v377, %v201
        %v389 = vadd.f32 %v378, %v203
        %v390 = vadd.f32 %v379, %v383
        %v391 = vadd.f32 %v380, %v384
        %v392 = vadd.f32 %v381, %v195
        %v393 = vadd.f32 %v382, %v195
        %v398 = vrot.slane %v181, 2
        %v399 = vrot.slane %v183, 2
        %v400 = vsel %vm224, %v398, %v399
        %v401 = vrot.slane %v182, 2
        %v402 = vrot.slane %v184, 2
        %v403 = vsel %vm224, %v401, %v402
        %v404 = vsel %vm224, %v399, %v225
        %v405 = vsel %vm224, %v402, %v225
        %v411 = vadd.f32 %v388, %v400
        %v412 = vadd.f32 %v389, %v403
        %v413 = vadd.f32 %v390, %v404
        %v414 = vadd.f32 %v391, %v405
        %v415 = vadd.f32 %v392, %v225
        %v416 = vadd.f32 %v393, %v225
        %v417 = vmul.f32 %v411, 0.09105938
        %v418 = vmul.f32 %v412, 0.09105938
        %v419 = vmul.f32 %v413, 0.09105938
        %v420 = vmul.f32 %v414, 0.09105938
        %v421 = vmul.f32 %v415, 0.09105938
        %v422 = vmul.f32 %v416, 0.09105938
        %v423 = vld [vmem:[#allocation5] ss:$8 sm:$0x3]
        %v430 = vrot.slane %v411, 3
        %v431 = vrot.slane %v413, 3
        %v432 = vsel %vm254, %v430, %v431
        %v433 = vrot.slane %v412, 3
        %v434 = vrot.slane %v414, 3
        %v435 = vsel %vm254, %v433, %v434
        %v436 = vrot.slane %v415, 3
        %v437 = vsel %vm254, %v431, %v436
        %v438 = vrot.slane %v416, 3
        %v439 = vsel %vm254, %v434, %v438
        %444 = vrot.lane.b32.xlu0 %v432, 112
        %v445 = vpop.permute.xlu0 %444
        %446 = vrot.lane.b32.xlu0 %v437, 112
        %v447 = vpop.permute.xlu0 %446
        %448 = vrot.lane.b32.xlu0 %v435, 112
        %v449 = vpop.permute.xlu0 %448
        %450 = vrot.lane.b32.xlu0 %v439, 112
        %v451 = vpop.permute.xlu0 %450
        %v452 = vlaneseq
        %v453 = vand.u32 %v452, 127
        %vm454 = vcmp.lt.s32.totalorder %v453, 112
        %v455 = vsel %vm454, %v445, %v449
        %v456 = vsel %vm454, %v447, %v451
        %v457 = vsel %vm454, %v449, %v445
        %v458 = vsel %vm454, %v451, %v447
        %v460 = vlaneseq
        %v461 = vshrl.u32 %v460, 7
        %v462 = vsub.s32 0, %v461
        %v463 = vrot.slane %v423, %v462
        %v464 = vlaneseq
        %v465 = vshrl.u32 %v464, 7
        %v466 = vsub.s32 1, %v465
        %v467 = vrot.slane %v423, %v466
        %v470 = vmul.f32 %v463, %v455
        %v471 = vmul.f32 %v467, %v457
        %v472 = vmul.f32 %v463, %v456
        %v473 = vmul.f32 %v467, %v458
        %v478 = vrot.slane %v470, 5
        %v479 = vrot.slane %v471, 5
        %v480 = vrot.slane %v472, 5
        %v481 = vsel %vm314, %v478, %v480
        %v482 = vrot.slane %v473, 5
        %v483 = vsel %vm314, %v479, %v482
        %v490 = vadd.f32 %v417, %v478
        %v491 = vadd.f32 %v418, %v479
        %v492 = vadd.f32 %v419, %v481
        %v493 = vadd.f32 %v420, %v483
        %v494 = vadd.f32 %v421, %v480
        %v495 = vadd.f32 %v422, %v482
        %s496 = scalar_lea.vmem [#allocation5], 1
        %v497 = vld [vmem:[%s496] ss:$8 sm:$0x3]
        %498 = vrot.lane.b32.xlu0 %v432, 16
        %v499 = vpop.permute.xlu0 %498
        %500 = vrot.lane.b32.xlu0 %v437, 16
        %v501 = vpop.permute.xlu0 %500
        %502 = vrot.lane.b32.xlu0 %v435, 16
        %v503 = vpop.permute.xlu0 %502
        %504 = vrot.lane.b32.xlu0 %v439, 16
        %v505 = vpop.permute.xlu0 %504
        %vm506 = vcmp.lt.s32.totalorder %v453, 16
        %v507 = vsel %vm506, %v499, %v503
        %v508 = vsel %vm506, %v501, %v505
        %v509 = vsel %vm506, %v503, %v499
        %v510 = vsel %vm506, %v505, %v501
        %v512 = vlaneseq
        %v513 = vshrl.u32 %v512, 7
        %v514 = vsub.s32 0, %v513
        %v515 = vrot.slane %v497, %v514
        %v516 = vlaneseq
        %v517 = vshrl.u32 %v516, 7
        %v518 = vsub.s32 1, %v517
        %v519 = vrot.slane %v497, %v518
        %v522 = vmul.f32 %v515, %v509
        %v523 = vmul.f32 %v519, %v507
        %v524 = vmul.f32 %v515, %v510
        %v525 = vmul.f32 %v519, %v508
        %v530 = vrot.slane %v522, 5
        %v531 = vrot.slane %v523, 5
        %v532 = vrot.slane %v524, 5
        %v533 = vsel %vm314, %v530, %v532
        %v534 = vrot.slane %v525, 5
        %v535 = vsel %vm314, %v531, %v534
        %v542 = vadd.f32 %v490, %v530
        %v543 = vadd.f32 %v491, %v531
        %v544 = vadd.f32 %v492, %v533
        %v545 = vadd.f32 %v493, %v535
        %v546 = vadd.f32 %v494, %v532
        %v547 = vadd.f32 %v495, %v534
        %s548 = scalar_lea.vmem [#allocation5], 2
        %v549 = vld [vmem:[%s548] ss:$8 sm:$0x3]
        %550 = vrot.lane.b32.xlu0 %v432, 96
        %v551 = vpop.permute.xlu0 %550
        %552 = vrot.lane.b32.xlu0 %v437, 96
        %v553 = vpop.permute.xlu0 %552
        %554 = vrot.lane.b32.xlu0 %v435, 96
        %v555 = vpop.permute.xlu0 %554
        %556 = vrot.lane.b32.xlu0 %v439, 96
        %v557 = vpop.permute.xlu0 %556
        %vm558 = vcmp.lt.s32.totalorder %v453, 96
        %v559 = vsel %vm558, %v551, %v555
        %v560 = vsel %vm558, %v553, %v557
        %v561 = vsel %vm558, %v555, %v551
        %v562 = vsel %vm558, %v557, %v553
        %v564 = vlaneseq
        %v565 = vshrl.u32 %v564, 7
        %v566 = vsub.s32 0, %v565
        %v567 = vrot.slane %v549, %v566
        %v568 = vlaneseq
        %v569 = vshrl.u32 %v568, 7
        %v570 = vsub.s32 1, %v569
        %v571 = vrot.slane %v549, %v570
        %v574 = vmul.f32 %v567, %v559
        %v575 = vmul.f32 %v571, %v561
        %v576 = vmul.f32 %v567, %v560
        %v577 = vmul.f32 %v571, %v562
        %v582 = vrot.slane %v574, 5
        %v583 = vrot.slane %v575, 5
        %v584 = vrot.slane %v576, 5
        %v585 = vsel %vm314, %v582, %v584
        %v586 = vrot.slane %v577, 5
        %v587 = vsel %vm314, %v583, %v586
        %v594 = vadd.f32 %v542, %v582
        %v595 = vadd.f32 %v543, %v583
        %v596 = vadd.f32 %v544, %v585
        %v597 = vadd.f32 %v545, %v587
        %v598 = vadd.f32 %v546, %v584
        %v599 = vadd.f32 %v547, %v586
        %s600 = scalar_lea.vmem [#allocation5], 3
        %v601 = vld [vmem:[%s600] ss:$8 sm:$0x3]
        %602 = vrot.lane.b32.xlu0 %v432, 32
        %v603 = vpop.permute.xlu0 %602
        %604 = vrot.lane.b32.xlu0 %v437, 32
        %v605 = vpop.permute.xlu0 %604
        %606 = vrot.lane.b32.xlu0 %v435, 32
        %v607 = vpop.permute.xlu0 %606
        %608 = vrot.lane.b32.xlu0 %v439, 32
        %v609 = vpop.permute.xlu0 %608
        %vm610 = vcmp.lt.s32.totalorder %v453, 32
        %v611 = vsel %vm610, %v603, %v607
        %v612 = vsel %vm610, %v605, %v609
        %v613 = vsel %vm610, %v607, %v603
        %v614 = vsel %vm610, %v609, %v605
        %v616 = vlaneseq
        %v617 = vshrl.u32 %v616, 7
        %v618 = vsub.s32 0, %v617
        %v619 = vrot.slane %v601, %v618
        %v620 = vlaneseq
        %v621 = vshrl.u32 %v620, 7
        %v622 = vsub.s32 1, %v621
        %v623 = vrot.slane %v601, %v622
        %v626 = vmul.f32 %v619, %v613
        %v627 = vmul.f32 %v623, %v611
        %v628 = vmul.f32 %v619, %v614
        %v629 = vmul.f32 %v623, %v612
        %v634 = vrot.slane %v626, 5
        %v635 = vrot.slane %v627, 5
        %v636 = vrot.slane %v628, 5
        %v637 = vsel %vm314, %v634, %v636
        %v638 = vrot.slane %v629, 5
        %v639 = vsel %vm314, %v635, %v638
        %v646 = vadd.f32 %v594, %v634
        %v647 = vadd.f32 %v595, %v635
        %v648 = vadd.f32 %v596, %v637
        %v649 = vadd.f32 %v597, %v639
        %v650 = vadd.f32 %v598, %v636
        %v651 = vadd.f32 %v599, %v638
        %s652 = scalar_lea.vmem [#allocation5], 4
        %v653 = vld [vmem:[%s652] ss:$8 sm:$0x3]
        %654 = vrot.lane.b32.xlu0 %v432, 80
        %v655 = vpop.permute.xlu0 %654
        %656 = vrot.lane.b32.xlu0 %v437, 80
        %v657 = vpop.permute.xlu0 %656
        %658 = vrot.lane.b32.xlu0 %v435, 80
        %v659 = vpop.permute.xlu0 %658
        %660 = vrot.lane.b32.xlu0 %v439, 80
        %v661 = vpop.permute.xlu0 %660
        %vm662 = vcmp.lt.s32.totalorder %v453, 80
        %v663 = vsel %vm662, %v655, %v659
        %v664 = vsel %vm662, %v657, %v661
        %v665 = vsel %vm662, %v659, %v655
        %v666 = vsel %vm662, %v661, %v657
        %v668 = vlaneseq
        %v669 = vshrl.u32 %v668, 7
        %v670 = vsub.s32 0, %v669
        %v671 = vrot.slane %v653, %v670
        %v672 = vlaneseq
        %v673 = vshrl.u32 %v672, 7
        %v674 = vsub.s32 1, %v673
        %v675 = vrot.slane %v653, %v674
        %v678 = vmul.f32 %v671, %v663
        %v679 = vmul.f32 %v675, %v665
        %v680 = vmul.f32 %v671, %v664
        %v681 = vmul.f32 %v675, %v666
        %v686 = vrot.slane %v678, 5
        %v687 = vrot.slane %v679, 5
        %v688 = vrot.slane %v680, 5
        %v689 = vsel %vm314, %v686, %v688
        %v690 = vrot.slane %v681, 5
        %v691 = vsel %vm314, %v687, %v690
        %v698 = vadd.f32 %v646, %v686
        %v699 = vadd.f32 %v647, %v687
        %v700 = vadd.f32 %v648, %v689
        %v701 = vadd.f32 %v649, %v691
        %v702 = vadd.f32 %v650, %v688
        %v703 = vadd.f32 %v651, %v690
        %s704 = scalar_lea.vmem [#allocation5], 5
        %v705 = vld [vmem:[%s704] ss:$8 sm:$0x3]
        %706 = vrot.lane.b32.xlu0 %v432, 48
        %v707 = vpop.permute.xlu0 %706
        %708 = vrot.lane.b32.xlu0 %v437, 48
        %v709 = vpop.permute.xlu0 %708
        %710 = vrot.lane.b32.xlu0 %v435, 48
        %v711 = vpop.permute.xlu0 %710
        %712 = vrot.lane.b32.xlu0 %v439, 48
        %v713 = vpop.permute.xlu0 %712
        %vm714 = vcmp.lt.s32.totalorder %v453, 48
        %v715 = vsel %vm714, %v707, %v711
        %v716 = vsel %vm714, %v709, %v713
        %v717 = vsel %vm714, %v711, %v707
        %v718 = vsel %vm714, %v713, %v709
        %v720 = vlaneseq
        %v721 = vshrl.u32 %v720, 7
        %v722 = vsub.s32 0, %v721
        %v723 = vrot.slane %v705, %v722
        %v724 = vlaneseq
        %v725 = vshrl.u32 %v724, 7
        %v726 = vsub.s32 1, %v725
        %v727 = vrot.slane %v705, %v726
        %v730 = vmul.f32 %v723, %v717
        %v731 = vmul.f32 %v727, %v715
        %v732 = vmul.f32 %v723, %v718
        %v733 = vmul.f32 %v727, %v716
        %v738 = vrot.slane %v730, 5
        %v739 = vrot.slane %v731, 5
        %v740 = vrot.slane %v732, 5
        %v741 = vsel %vm314, %v738, %v740
        %v742 = vrot.slane %v733, 5
        %v743 = vsel %vm314, %v739, %v742
        %v750 = vadd.f32 %v698, %v738
        %v751 = vadd.f32 %v699, %v739
        %v752 = vadd.f32 %v700, %v741
        %v753 = vadd.f32 %v701, %v743
        %v754 = vadd.f32 %v702, %v740
        %v755 = vadd.f32 %v703, %v742
        %s756 = scalar_lea.vmem [#allocation5], 6
        %v757 = vld [vmem:[%s756] ss:$8 sm:$0x3]
        %758 = vrot.lane.b32.xlu0 %v432, 64
        %v759 = vpop.permute.xlu0 %758
        %760 = vrot.lane.b32.xlu0 %v437, 64
        %v761 = vpop.permute.xlu0 %760
        %762 = vrot.lane.b32.xlu0 %v435, 64
        %v763 = vpop.permute.xlu0 %762
        %764 = vrot.lane.b32.xlu0 %v439, 64
        %v765 = vpop.permute.xlu0 %764
        %vm766 = vcmp.lt.s32.totalorder %v453, 64
        %v767 = vsel %vm766, %v759, %v763
        %v768 = vsel %vm766, %v761, %v765
        %v769 = vsel %vm766, %v763, %v759
        %v770 = vsel %vm766, %v765, %v761
        %v772 = vlaneseq
        %v773 = vshrl.u32 %v772, 7
        %v774 = vsub.s32 0, %v773
        %v775 = vrot.slane %v757, %v774
        %v776 = vlaneseq
        %v777 = vshrl.u32 %v776, 7
        %v778 = vsub.s32 1, %v777
        %v779 = vrot.slane %v757, %v778
        %v782 = vmul.f32 %v775, %v767
        %v783 = vmul.f32 %v779, %v769
        %v784 = vmul.f32 %v775, %v768
        %v785 = vmul.f32 %v779, %v770
        %v790 = vrot.slane %v782, 5
        %v791 = vrot.slane %v783, 5
        %v792 = vrot.slane %v784, 5
        %v793 = vsel %vm314, %v790, %v792
        %v794 = vrot.slane %v785, 5
        %v795 = vsel %vm314, %v791, %v794
        %v802 = vadd.f32 %v750, %v790
        %v803 = vadd.f32 %v751, %v791
        %v804 = vadd.f32 %v752, %v793
        %v805 = vadd.f32 %v753, %v795
        %v806 = vadd.f32 %v754, %v792
        %v807 = vadd.f32 %v755, %v794
        %s808 = scalar_lea.vmem [#allocation5], 7
        %v809 = vld [vmem:[%s808] ss:$8 sm:$0x3]
        %v811 = vlaneseq
        %v812 = vshrl.u32 %v811, 7
        %v813 = vsub.s32 0, %v812
        %v814 = vrot.slane %v809, %v813
        %v815 = vlaneseq
        %v816 = vshrl.u32 %v815, 7
        %v817 = vsub.s32 1, %v816
        %v818 = vrot.slane %v809, %v817
        %v821 = vmul.f32 %v814, %v769
        %v822 = vmul.f32 %v818, %v767
        %v823 = vmul.f32 %v814, %v770
        %v824 = vmul.f32 %v818, %v768
        %v829 = vrot.slane %v821, 5
        %v830 = vrot.slane %v822, 5
        %v831 = vrot.slane %v823, 5
        %v832 = vsel %vm314, %v829, %v831
        %v833 = vrot.slane %v824, 5
        %v834 = vsel %vm314, %v830, %v833
        %v841 = vadd.f32 %v802, %v829
        %v842 = vadd.f32 %v803, %v830
        %v843 = vadd.f32 %v804, %v832
        %v844 = vadd.f32 %v805, %v834
        %v845 = vadd.f32 %v806, %v831
        %v846 = vadd.f32 %v807, %v833
        %s847 = scalar_lea.vmem [#allocation5], 16
        %v848 = vld [vmem:[%s847] ss:$8 sm:$0x3]
        %v850 = vlaneseq
        %v851 = vshrl.u32 %v850, 7
        %v852 = vsub.s32 0, %v851
        %v853 = vrot.slane %v848, %v852
        %v854 = vlaneseq
        %v855 = vshrl.u32 %v854, 7
        %v856 = vsub.s32 1, %v855
        %v857 = vrot.slane %v848, %v856
        %v860 = vmul.f32 %v853, %v715
        %v861 = vmul.f32 %v857, %v717
        %v862 = vmul.f32 %v853, %v716
        %v863 = vmul.f32 %v857, %v718
        %v868 = vrot.slane %v860, 5
        %v869 = vrot.slane %v861, 5
        %v870 = vrot.slane %v862, 5
        %v871 = vsel %vm314, %v868, %v870
        %v872 = vrot.slane %v863, 5
        %v873 = vsel %vm314, %v869, %v872
        %v880 = vadd.f32 %v841, %v868
        %v881 = vadd.f32 %v842, %v869
        %v882 = vadd.f32 %v843, %v871
        %v883 = vadd.f32 %v844, %v873
        %v884 = vadd.f32 %v845, %v870
        %v885 = vadd.f32 %v846, %v872
        %s886 = scalar_lea.vmem [#allocation5], 17
        %v887 = vld [vmem:[%s886] ss:$8 sm:$0x3]
        %v889 = vlaneseq
        %v890 = vshrl.u32 %v889, 7
        %v891 = vsub.s32 0, %v890
        %v892 = vrot.slane %v887, %v891
        %v893 = vlaneseq
        %v894 = vshrl.u32 %v893, 7
        %v895 = vsub.s32 1, %v894
        %v896 = vrot.slane %v887, %v895
        %v899 = vmul.f32 %v892, %v665
        %v900 = vmul.f32 %v896, %v663
        %v901 = vmul.f32 %v892, %v666
        %v902 = vmul.f32 %v896, %v664
        %v907 = vrot.slane %v899, 5
        %v908 = vrot.slane %v900, 5
        %v909 = vrot.slane %v901, 5
        %v910 = vsel %vm314, %v907, %v909
        %v911 = vrot.slane %v902, 5
        %v912 = vsel %vm314, %v908, %v911
        %v919 = vadd.f32 %v880, %v907
        %v920 = vadd.f32 %v881, %v908
        %v921 = vadd.f32 %v882, %v910
        %v922 = vadd.f32 %v883, %v912
        %v923 = vadd.f32 %v884, %v909
        %v924 = vadd.f32 %v885, %v911
        %v925 = vmul.f32 %v919, 0.09105938
        %v926 = vmul.f32 %v920, 0.09105938
        %v927 = vmul.f32 %v921, 0.09105938
        %v928 = vmul.f32 %v922, 0.09105938
        %v929 = vmul.f32 %v923, 0.09105938
        %v930 = vmul.f32 %v924, 0.09105938
        %s931 = scalar_lea.vmem [#allocation5], 18
        %v932 = vld [vmem:[%s931] ss:$8 sm:$0x3]
        %v939 = vrot.slane %v919, 3
        %v940 = vrot.slane %v921, 3
        %v941 = vsel %vm254, %v939, %v940
        %v942 = vrot.slane %v920, 3
        %v943 = vrot.slane %v922, 3
        %v944 = vsel %vm254, %v942, %v943
        %v945 = vrot.slane %v923, 3
        %v946 = vsel %vm254, %v940, %v945
        %v947 = vrot.slane %v924, 3
        %v948 = vsel %vm254, %v943, %v947
        %953 = vrot.lane.b32.xlu0 %v941, 127
        %v954 = vpop.permute.xlu0 %953
        %955 = vrot.lane.b32.xlu0 %v946, 127
        %v956 = vpop.permute.xlu0 %955
        %957 = vrot.lane.b32.xlu0 %v944, 127
        %v958 = vpop.permute.xlu0 %957
        %959 = vrot.lane.b32.xlu0 %v948, 127
        %v960 = vpop.permute.xlu0 %959
        %vm961 = vcmp.lt.s32.totalorder %v453, 127
        %v962 = vsel %vm961, %v954, %v958
        %v963 = vsel %vm961, %v956, %v960
        %v964 = vsel %vm961, %v958, %v954
        %v965 = vsel %vm961, %v960, %v956
        %v967 = vlaneseq
        %v968 = vshrl.u32 %v967, 7
        %v969 = vsub.s32 0, %v968
        %v970 = vrot.slane %v932, %v969
        %v971 = vlaneseq
        %v972 = vshrl.u32 %v971, 7
        %v973 = vsub.s32 1, %v972
        %v974 = vrot.slane %v932, %v973
        %v977 = vmul.f32 %v970, %v962
        %v978 = vmul.f32 %v974, %v964
        %v979 = vmul.f32 %v970, %v963
        %v980 = vmul.f32 %v974, %v965
        %v985 = vrot.slane %v977, 5
        %v986 = vrot.slane %v978, 5
        %v987 = vrot.slane %v979, 5
        %v988 = vsel %vm314, %v985, %v987
        %v989 = vrot.slane %v980, 5
        %v990 = vsel %vm314, %v986, %v989
        %v997 = vadd.f32 %v925, %v985
        %v998 = vadd.f32 %v926, %v986
        %v999 = vadd.f32 %v927, %v988
        %v1000 = vadd.f32 %v928, %v990
        %v1001 = vadd.f32 %v929, %v987
        %v1002 = vadd.f32 %v930, %v989
        %s1003 = scalar_lea.vmem [#allocation5], 19
        %v1004 = vld [vmem:[%s1003] ss:$8 sm:$0x3]
        %1005 = vrot.lane.b32.xlu0 %v941, 1
        %v1006 = vpop.permute.xlu0 %1005
        %1007 = vrot.lane.b32.xlu0 %v946, 1
        %v1008 = vpop.permute.xlu0 %1007
        %1009 = vrot.lane.b32.xlu0 %v944, 1
        %v1010 = vpop.permute.xlu0 %1009
        %1011 = vrot.lane.b32.xlu0 %v948, 1
        %v1012 = vpop.permute.xlu0 %1011
        %vm1013 = vcmp.lt.s32.totalorder %v453, 1
        %v1014 = vsel %vm1013, %v1006, %v1010
        %v1015 = vsel %vm1013, %v1008, %v1012
        %v1016 = vsel %vm1013, %v1010, %v1006
        %v1017 = vsel %vm1013, %v1012, %v1008
        %v1019 = vlaneseq
        %v1020 = vshrl.u32 %v1019, 7
        %v1021 = vsub.s32 0, %v1020
        %v1022 = vrot.slane %v1004, %v1021
        %v1023 = vlaneseq
        %v1024 = vshrl.u32 %v1023, 7
        %v1025 = vsub.s32 1, %v1024
        %v1026 = vrot.slane %v1004, %v1025
        %v1029 = vmul.f32 %v1022, %v1016
        %v1030 = vmul.f32 %v1026, %v1014
        %v1031 = vmul.f32 %v1022, %v1017
        %v1032 = vmul.f32 %v1026, %v1015
        %v1037 = vrot.slane %v1029, 5
        %v1038 = vrot.slane %v1030, 5
        %v1039 = vrot.slane %v1031, 5
        %v1040 = vsel %vm314, %v1037, %v1039
        %v1041 = vrot.slane %v1032, 5
        %v1042 = vsel %vm314, %v1038, %v1041
        %v1049 = vadd.f32 %v997, %v1037
        %v1050 = vadd.f32 %v998, %v1038
        %v1051 = vadd.f32 %v999, %v1040
        %v1052 = vadd.f32 %v1000, %v1042
        %v1053 = vadd.f32 %v1001, %v1039
        %v1054 = vadd.f32 %v1002, %v1041
        %s1055 = scalar_lea.vmem [#allocation5], 20
        %v1056 = vld [vmem:[%s1055] ss:$8 sm:$0x3]
        %1057 = vrot.lane.b32.xlu0 %v941, 126
        %v1058 = vpop.permute.xlu0 %1057
        %1059 = vrot.lane.b32.xlu0 %v946, 126
        %v1060 = vpop.permute.xlu0 %1059
        %1061 = vrot.lane.b32.xlu0 %v944, 126
        %v1062 = vpop.permute.xlu0 %1061
        %1063 = vrot.lane.b32.xlu0 %v948, 126
        %v1064 = vpop.permute.xlu0 %1063
        %vm1065 = vcmp.lt.s32.totalorder %v453, 126
        %v1066 = vsel %vm1065, %v1058, %v1062
        %v1067 = vsel %vm1065, %v1060, %v1064
        %v1068 = vsel %vm1065, %v1062, %v1058
        %v1069 = vsel %vm1065, %v1064, %v1060
        %v1071 = vlaneseq
        %v1072 = vshrl.u32 %v1071, 7
        %v1073 = vsub.s32 0, %v1072
        %v1074 = vrot.slane %v1056, %v1073
        %v1075 = vlaneseq
        %v1076 = vshrl.u32 %v1075, 7
        %v1077 = vsub.s32 1, %v1076
        %v1078 = vrot.slane %v1056, %v1077
        %v1081 = vmul.f32 %v1074, %v1066
        %v1082 = vmul.f32 %v1078, %v1068
        %v1083 = vmul.f32 %v1074, %v1067
        %v1084 = vmul.f32 %v1078, %v1069
        %v1089 = vrot.slane %v1081, 5
        %v1090 = vrot.slane %v1082, 5
        %v1091 = vrot.slane %v1083, 5
        %v1092 = vsel %vm314, %v1089, %v1091
        %v1093 = vrot.slane %v1084, 5
        %v1094 = vsel %vm314, %v1090, %v1093
        %v1101 = vadd.f32 %v1049, %v1089
        %v1102 = vadd.f32 %v1050, %v1090
        %v1103 = vadd.f32 %v1051, %v1092
        %v1104 = vadd.f32 %v1052, %v1094
        %v1105 = vadd.f32 %v1053, %v1091
        %v1106 = vadd.f32 %v1054, %v1093
        %s1107 = scalar_lea.vmem [#allocation5], 21
        %v1108 = vld [vmem:[%s1107] ss:$8 sm:$0x3]
        %1109 = vrot.lane.b32.xlu0 %v941, 2
        %v1110 = vpop.permute.xlu0 %1109
        %1111 = vrot.lane.b32.xlu0 %v946, 2
        %v1112 = vpop.permute.xlu0 %1111
        %1113 = vrot.lane.b32.xlu0 %v944, 2
        %v1114 = vpop.permute.xlu0 %1113
        %1115 = vrot.lane.b32.xlu0 %v948, 2
        %v1116 = vpop.permute.xlu0 %1115
        %vm1117 = vcmp.lt.s32.totalorder %v453, 2
        %v1118 = vsel %vm1117, %v1110, %v1114
        %v1119 = vsel %vm1117, %v1112, %v1116
        %v1120 = vsel %vm1117, %v1114, %v1110
        %v1121 = vsel %vm1117, %v1116, %v1112
        %v1123 = vlaneseq
        %v1124 = vshrl.u32 %v1123, 7
        %v1125 = vsub.s32 0, %v1124
        %v1126 = vrot.slane %v1108, %v1125
        %v1127 = vlaneseq
        %v1128 = vshrl.u32 %v1127, 7
        %v1129 = vsub.s32 1, %v1128
        %v1130 = vrot.slane %v1108, %v1129
        %v1133 = vmul.f32 %v1126, %v1120
        %v1134 = vmul.f32 %v1130, %v1118
        %v1135 = vmul.f32 %v1126, %v1121
        %v1136 = vmul.f32 %v1130, %v1119
        %v1141 = vrot.slane %v1133, 5
        %v1142 = vrot.slane %v1134, 5
        %v1143 = vrot.slane %v1135, 5
        %v1144 = vsel %vm314, %v1141, %v1143
        %v1145 = vrot.slane %v1136, 5
        %v1146 = vsel %vm314, %v1142, %v1145
        %v1153 = vadd.f32 %v1101, %v1141
        %v1154 = vadd.f32 %v1102, %v1142
        %v1155 = vadd.f32 %v1103, %v1144
        %v1156 = vadd.f32 %v1104, %v1146
        %v1157 = vadd.f32 %v1105, %v1143
        %v1158 = vadd.f32 %v1106, %v1145
        %s1159 = scalar_lea.vmem [#allocation5], 22
        %v1160 = vld [vmem:[%s1159] ss:$8 sm:$0x3]
        %1161 = vrot.lane.b32.xlu0 %v941, 125
        %v1162 = vpop.permute.xlu0 %1161
        %1163 = vrot.lane.b32.xlu0 %v946, 125
        %v1164 = vpop.permute.xlu0 %1163
        %1165 = vrot.lane.b32.xlu0 %v944, 125
        %v1166 = vpop.permute.xlu0 %1165
        %1167 = vrot.lane.b32.xlu0 %v948, 125
        %v1168 = vpop.permute.xlu0 %1167
        %vm1169 = vcmp.lt.s32.totalorder %v453, 125
        %v1170 = vsel %vm1169, %v1162, %v1166
        %v1171 = vsel %vm1169, %v1164, %v1168
        %v1172 = vsel %vm1169, %v1166, %v1162
        %v1173 = vsel %vm1169, %v1168, %v1164
        %v1175 = vlaneseq
        %v1176 = vshrl.u32 %v1175, 7
        %v1177 = vsub.s32 0, %v1176
        %v1178 = vrot.slane %v1160, %v1177
        %v1179 = vlaneseq
        %v1180 = vshrl.u32 %v1179, 7
        %v1181 = vsub.s32 1, %v1180
        %v1182 = vrot.slane %v1160, %v1181
        %v1185 = vmul.f32 %v1178, %v1170
        %v1186 = vmul.f32 %v1182, %v1172
        %v1187 = vmul.f32 %v1178, %v1171
        %v1188 = vmul.f32 %v1182, %v1173
        %v1193 = vrot.slane %v1185, 5
        %v1194 = vrot.slane %v1186, 5
        %v1195 = vrot.slane %v1187, 5
        %v1196 = vsel %vm314, %v1193, %v1195
        %v1197 = vrot.slane %v1188, 5
        %v1198 = vsel %vm314, %v1194, %v1197
        %v1205 = vadd.f32 %v1153, %v1193
        %v1206 = vadd.f32 %v1154, %v1194
        %v1207 = vadd.f32 %v1155, %v1196
        %v1208 = vadd.f32 %v1156, %v1198
        %v1209 = vadd.f32 %v1157, %v1195
        %v1210 = vadd.f32 %v1158, %v1197
        %s1211 = scalar_lea.vmem [#allocation5], 23
        %v1212 = vld [vmem:[%s1211] ss:$8 sm:$0x3]
        %1213 = vrot.lane.b32.xlu0 %v941, 3
        %v1214 = vpop.permute.xlu0 %1213
        %1215 = vrot.lane.b32.xlu0 %v946, 3
        %v1216 = vpop.permute.xlu0 %1215
        %1217 = vrot.lane.b32.xlu0 %v944, 3
        %v1218 = vpop.permute.xlu0 %1217
        %1219 = vrot.lane.b32.xlu0 %v948, 3
        %v1220 = vpop.permute.xlu0 %1219
        %vm1221 = vcmp.lt.s32.totalorder %v453, 3
        %v1222 = vsel %vm1221, %v1214, %v1218
        %v1223 = vsel %vm1221, %v1216, %v1220
        %v1224 = vsel %vm1221, %v1218, %v1214
        %v1225 = vsel %vm1221, %v1220, %v1216
        %v1227 = vlaneseq
        %v1228 = vshrl.u32 %v1227, 7
        %v1229 = vsub.s32 0, %v1228
        %v1230 = vrot.slane %v1212, %v1229
        %v1231 = vlaneseq
        %v1232 = vshrl.u32 %v1231, 7
        %v1233 = vsub.s32 1, %v1232
        %v1234 = vrot.slane %v1212, %v1233
        %v1237 = vmul.f32 %v1230, %v1224
        %v1238 = vmul.f32 %v1234, %v1222
        %v1239 = vmul.f32 %v1230, %v1225
        %v1240 = vmul.f32 %v1234, %v1223
        %v1245 = vrot.slane %v1237, 5
        %v1246 = vrot.slane %v1238, 5
        %v1247 = vrot.slane %v1239, 5
        %v1248 = vsel %vm314, %v1245, %v1247
        %v1249 = vrot.slane %v1240, 5
        %v1250 = vsel %vm314, %v1246, %v1249
        %v1257 = vadd.f32 %v1205, %v1245
        %v1258 = vadd.f32 %v1206, %v1246
        %v1259 = vadd.f32 %v1207, %v1248
        %v1260 = vadd.f32 %v1208, %v1250
        %v1261 = vadd.f32 %v1209, %v1247
        %v1262 = vadd.f32 %v1210, %v1249
        %s1263 = scalar_lea.vmem [#allocation5], 32
        %v1264 = vld [vmem:[%s1263] ss:$8 sm:$0x3]
        %1265 = vrot.lane.b32.xlu0 %v941, 124
        %v1266 = vpop.permute.xlu0 %1265
        %1267 = vrot.lane.b32.xlu0 %v946, 124
        %v1268 = vpop.permute.xlu0 %1267
        %1269 = vrot.lane.b32.xlu0 %v944, 124
        %v1270 = vpop.permute.xlu0 %1269
        %1271 = vrot.lane.b32.xlu0 %v948, 124
        %v1272 = vpop.permute.xlu0 %1271
        %vm1273 = vcmp.lt.s32.totalorder %v453, 124
        %v1274 = vsel %vm1273, %v1266, %v1270
        %v1275 = vsel %vm1273, %v1268, %v1272
        %v1276 = vsel %vm1273, %v1270, %v1266
        %v1277 = vsel %vm1273, %v1272, %v1268
        %v1279 = vlaneseq
        %v1280 = vshrl.u32 %v1279, 7
        %v1281 = vsub.s32 0, %v1280
        %v1282 = vrot.slane %v1264, %v1281
        %v1283 = vlaneseq
        %v1284 = vshrl.u32 %v1283, 7
        %v1285 = vsub.s32 1, %v1284
        %v1286 = vrot.slane %v1264, %v1285
        %v1289 = vmul.f32 %v1282, %v1274
        %v1290 = vmul.f32 %v1286, %v1276
        %v1291 = vmul.f32 %v1282, %v1275
        %v1292 = vmul.f32 %v1286, %v1277
        %v1297 = vrot.slane %v1289, 5
        %v1298 = vrot.slane %v1290, 5
        %v1299 = vrot.slane %v1291, 5
        %v1300 = vsel %vm314, %v1297, %v1299
        %v1301 = vrot.slane %v1292, 5
        %v1302 = vsel %vm314, %v1298, %v1301
        %v1309 = vadd.f32 %v1257, %v1297
        %v1310 = vadd.f32 %v1258, %v1298
        %v1311 = vadd.f32 %v1259, %v1300
        %v1312 = vadd.f32 %v1260, %v1302
        %v1313 = vadd.f32 %v1261, %v1299
        %v1314 = vadd.f32 %v1262, %v1301
        %s1315 = scalar_lea.vmem [#allocation5], 33
        %v1316 = vld [vmem:[%s1315] ss:$8 sm:$0x3]
        %1317 = vrot.lane.b32.xlu0 %v941, 4
        %v1318 = vpop.permute.xlu0 %1317
        %1319 = vrot.lane.b32.xlu0 %v946, 4
        %v1320 = vpop.permute.xlu0 %1319
        %1321 = vrot.lane.b32.xlu0 %v944, 4
        %v1322 = vpop.permute.xlu0 %1321
        %1323 = vrot.lane.b32.xlu0 %v948, 4
        %v1324 = vpop.permute.xlu0 %1323
        %vm1325 = vcmp.lt.s32.totalorder %v453, 4
        %v1326 = vsel %vm1325, %v1318, %v1322
        %v1327 = vsel %vm1325, %v1320, %v1324
        %v1328 = vsel %vm1325, %v1322, %v1318
        %v1329 = vsel %vm1325, %v1324, %v1320
        %v1331 = vlaneseq
        %v1332 = vshrl.u32 %v1331, 7
        %v1333 = vsub.s32 0, %v1332
        %v1334 = vrot.slane %v1316, %v1333
        %v1335 = vlaneseq
        %v1336 = vshrl.u32 %v1335, 7
        %v1337 = vsub.s32 1, %v1336
        %v1338 = vrot.slane %v1316, %v1337
        %v1341 = vmul.f32 %v1334, %v1328
        %v1342 = vmul.f32 %v1338, %v1326
        %v1343 = vmul.f32 %v1334, %v1329
        %v1344 = vmul.f32 %v1338, %v1327
        %v1349 = vrot.slane %v1341, 5
        %v1350 = vrot.slane %v1342, 5
        %v1351 = vrot.slane %v1343, 5
        %v1352 = vsel %vm314, %v1349, %v1351
        %v1353 = vrot.slane %v1344, 5
        %v1354 = vsel %vm314, %v1350, %v1353
        %v1361 = vadd.f32 %v1309, %v1349
        %v1362 = vadd.f32 %v1310, %v1350
        %v1363 = vadd.f32 %v1311, %v1352
        %v1364 = vadd.f32 %v1312, %v1354
        %v1365 = vadd.f32 %v1313, %v1351
        %v1366 = vadd.f32 %v1314, %v1353
        %s1367 = scalar_lea.vmem [#allocation5], 34
        %v1368 = vld [vmem:[%s1367] ss:$8 sm:$0x3]
        %1369 = vrot.lane.b32.xlu0 %v941, 123
        %v1370 = vpop.permute.xlu0 %1369
        %1371 = vrot.lane.b32.xlu0 %v946, 123
        %v1372 = vpop.permute.xlu0 %1371
        %1373 = vrot.lane.b32.xlu0 %v944, 123
        %v1374 = vpop.permute.xlu0 %1373
        %1375 = vrot.lane.b32.xlu0 %v948, 123
        %v1376 = vpop.permute.xlu0 %1375
        %vm1377 = vcmp.lt.s32.totalorder %v453, 123
        %v1378 = vsel %vm1377, %v1370, %v1374
        %v1379 = vsel %vm1377, %v1372, %v1376
        %v1380 = vsel %vm1377, %v1374, %v1370
        %v1381 = vsel %vm1377, %v1376, %v1372
        %v1383 = vlaneseq
        %v1384 = vshrl.u32 %v1383, 7
        %v1385 = vsub.s32 0, %v1384
        %v1386 = vrot.slane %v1368, %v1385
        %v1387 = vlaneseq
        %v1388 = vshrl.u32 %v1387, 7
        %v1389 = vsub.s32 1, %v1388
        %v1390 = vrot.slane %v1368, %v1389
        %v1393 = vmul.f32 %v1386, %v1378
        %v1394 = vmul.f32 %v1390, %v1380
        %v1395 = vmul.f32 %v1386, %v1379
        %v1396 = vmul.f32 %v1390, %v1381
        %v1401 = vrot.slane %v1393, 5
        %v1402 = vrot.slane %v1394, 5
        %v1403 = vrot.slane %v1395, 5
        %v1404 = vsel %vm314, %v1401, %v1403
        %v1405 = vrot.slane %v1396, 5
        %v1406 = vsel %vm314, %v1402, %v1405
        %v1413 = vadd.f32 %v1361, %v1401
        %v1414 = vadd.f32 %v1362, %v1402
        %v1415 = vadd.f32 %v1363, %v1404
        %v1416 = vadd.f32 %v1364, %v1406
        %v1417 = vadd.f32 %v1365, %v1403
        %v1418 = vadd.f32 %v1366, %v1405
        %s1419 = scalar_lea.vmem [#allocation5], 35
        %v1420 = vld [vmem:[%s1419] ss:$8 sm:$0x3]
        %1421 = vrot.lane.b32.xlu0 %v941, 5
        %v1422 = vpop.permute.xlu0 %1421
        %1423 = vrot.lane.b32.xlu0 %v946, 5
        %v1424 = vpop.permute.xlu0 %1423
        %1425 = vrot.lane.b32.xlu0 %v944, 5
        %v1426 = vpop.permute.xlu0 %1425
        %1427 = vrot.lane.b32.xlu0 %v948, 5
        %v1428 = vpop.permute.xlu0 %1427
        %vm1429 = vcmp.lt.s32.totalorder %v453, 5
        %v1430 = vsel %vm1429, %v1422, %v1426
        %v1431 = vsel %vm1429, %v1424, %v1428
        %v1432 = vsel %vm1429, %v1426, %v1422
        %v1433 = vsel %vm1429, %v1428, %v1424
        %v1435 = vlaneseq
        %v1436 = vshrl.u32 %v1435, 7
        %v1437 = vsub.s32 0, %v1436
        %v1438 = vrot.slane %v1420, %v1437
        %v1439 = vlaneseq
        %v1440 = vshrl.u32 %v1439, 7
        %v1441 = vsub.s32 1, %v1440
        %v1442 = vrot.slane %v1420, %v1441
        %v1445 = vmul.f32 %v1438, %v1432
        %v1446 = vmul.f32 %v1442, %v1430
        %v1447 = vmul.f32 %v1438, %v1433
        %v1448 = vmul.f32 %v1442, %v1431
        %v1453 = vrot.slane %v1445, 5
        %v1454 = vrot.slane %v1446, 5
        %v1455 = vrot.slane %v1447, 5
        %v1456 = vsel %vm314, %v1453, %v1455
        %v1457 = vrot.slane %v1448, 5
        %v1458 = vsel %vm314, %v1454, %v1457
        %v1465 = vadd.f32 %v1413, %v1453
        %v1466 = vadd.f32 %v1414, %v1454
        %v1467 = vadd.f32 %v1415, %v1456
        %v1468 = vadd.f32 %v1416, %v1458
        %v1469 = vadd.f32 %v1417, %v1455
        %v1470 = vadd.f32 %v1418, %v1457
        %v1477 = vrot.slane %v1465, 3
        %v1478 = vrot.slane %v1467, 3
        %v1479 = vsel %vm254, %v1477, %v1478
        %v1480 = vrot.slane %v1466, 3
        %v1481 = vrot.slane %v1468, 3
        %v1482 = vsel %vm254, %v1480, %v1481
        %v1483 = vrot.slane %v1469, 3
        %v1484 = vsel %vm254, %v1478, %v1483
        %v1485 = vrot.slane %v1470, 3
        %v1486 = vsel %vm254, %v1481, %v1485
        %1491 = vst [vmem:[%s176] sm:$0xff] %v1479
        %1492 = vst [vmem:[%s176 + $0x8] sm:$0xff] %v1482
        %1493 = vst [vmem:[%s176 + $0x10] sm:$0xff] %v1484
        %1494 = vst [vmem:[%s176 + $0x18] sm:$0xff] %v1486
        %s1495 = sand.u32 %s75, 1
        %s1496 = scalar_lea.sflag [#allocation4], %s1495
        %s1497 = sand.u32 %s75, 1
        %s1498 = smul.addr %s1497, 32
        %s1499 = scalar_lea.vmem [#allocation7], %s1498
        // Predicated region
        $region37: #{tpu_custom_call.1} parent=27 // pred_check
          %p1500 = pneg %p85
        $region38: #{tpu_custom_call.1} parent=27 // pred_check_branch
          %1502 = sbr.rel (%p1500) target = $region40
        $region39: #{tpu_custom_call.1} parent=27 // pred_region
          %s1504 = ssub.s32 512, 512
          %1505 = vsyncadd %s1496, %s1504
          %s1506 = smul.addr %s20, 4
          %s1507 = smul.addr %s1506, 128
          %s1508 = scalar_lea.hbm %s2, %s1507
          %s1509 = sshll.u32 %s1499, 4
          %s1510 = int_to_ptr.vmem [resolvable:$true] %s1509
          %1515 = dma.vmem_to_hbm [thread:$0]  %s1510, 512, %s1508, %s1496, 256, 256, 16
        $region40: #{tpu_custom_call.1} parent=27 // pred_fallthru
          _
      $region28: #{tpu_custom_call.1} parent=5 // pred_fallthru
        _
      %p1516 = scmp.le.s32.totalorder 2, %s15
      // Predicated region
      $region41: #{tpu_custom_call.1} parent=5 // pred_check
        %p1517 = pneg %p1516
      $region42: #{tpu_custom_call.1} parent=5 // pred_check_branch
        %1519 = sbr.rel (%p1517) target = $region44
      $region43: #{tpu_custom_call.1} parent=5 // pred_region
        %s1520 = ssub.s32 %s15, 2
        // Predicated region
        $region45: #{tpu_custom_call.1} parent=43 // pred_check
          %p1521 = pneg %p91
        $region46: #{tpu_custom_call.1} parent=43 // pred_check_branch
          %1523 = sbr.rel (%p1521) target = $region48
        $region47: #{tpu_custom_call.1} parent=43 // pred_region
          %s1524 = sand.u32 %s76, 1
          %s1525 = scalar_lea.sflag [#allocation4], %s1524
          %s1526 = sand.u32 %s76, 1
          %s1527 = smul.addr %s1526, 32
          %s1528 = scalar_lea.vmem [#allocation7], %s1527
          %1529 = dma.done %s1525, 512
        $region48: #{tpu_custom_call.1} parent=43 // pred_fallthru
          _
      $region44: #{tpu_custom_call.1} parent=5 // pred_fallthru
        _
    $region6: #{tpu_custom_call.1} parent=1 // loop_footer
      %s19 = sadd.s32 1, %s15
    $region7: #{tpu_custom_call.1} parent=1 // loop_footer_branch
      %14 = sbr.rel target = $region3
    $region8: #{tpu_custom_call.1} parent=1 // loop_exit
      _
    %1530 = vsyncpa [#allocation3], 1
    %s1531 = scalar_lea.sflag [#allocation3], 1
    %1532 = vsyncpa %s1531, 1
    %1533 = vsyncpa [#allocation6], 1
    %1534 = vsyncpa [#allocation4], 1
    %s1535 = scalar_lea.sflag [#allocation4], 1
    %1536 = vsyncpa %s1535, 1

</llo_original>
